<compile_context>
chip_gen: v7x
topology: tpu7x:2x2x1
jax: 0.10.0
libtpu: 0.0.40
codegen_flags: <defaults>
</compile_context>

<pallas_src>
import functools

import jax
import jax.numpy as jnp
import numpy as np
from jax.experimental import pallas as pl
from jax.experimental.pallas import tpu as pltpu


_VMEM_SOFT_BUDGET = 12 << 20   # bytes; conservative (fits v5e's 16 MiB scoped default)


def _leaky_relu(x, slope=0.01):
    return jnp.where(x >= 0, x, slope * x)


def _num_tensorcores():
    """2 on v7x (two TensorCores per chip), else 1.  Safe fallback = 1."""
    try:
        kind = jax.devices()[0].device_kind.lower()
    except Exception:
        return 1
    return 2 if "v7" in kind else 1


def _make_kernel(n_head, att_dim, v_dim, dc, inv_scale, bb, T, D):
    dqk = att_dim // n_head        # per-head query/key dim (= n_input // n_head)
    dv = v_dim // n_head           # per-head value dim     (= n_input // 2)

    def kernel(x_ref, wc_ref, bc_ref, wo_ref, bo_ref, out_ref):
        # ---- combined projection + leaky_relu: one (rows, D) @ (D, Dc) matmul
        x = x_ref[...]                                               # (bb*T, D)
        proj = jnp.dot(x, wc_ref[...], preferred_element_type=jnp.float32)
        proj = _leaky_relu(proj + bc_ref[...])                       # (bb*T, Dc)
        proj3 = proj.reshape(bb, T, dc)                              # (bb, T, Dc)

        # split into queries / keys / values; fold 1/scale into q once (exact)
        q = proj3[..., :att_dim] * inv_scale
        k = proj3[..., att_dim:2 * att_dim]
        v = proj3[..., 2 * att_dim:]

        # ---- attention with the output projection fused into the head loop --
        # No (bb, T, v_dim) scratch slab and no masked lane-offset stores.
        # TODO(synk): at larger T / head counts replace the per-head lane slices
        # with a single two-batch-dim einsum ('bthd,bshd->bhts'); kept unrolled
        # here because the 4-D transposes it implies are riskier to lower and
        # the XLU lane slices are cheap at T=8.
        o_acc = jnp.zeros((bb * T, D), jnp.float32)
        for h in range(n_head):
            qh = q[..., h * dqk:(h + 1) * dqk]                       # (bb, T, dqk)
            kh = k[..., h * dqk:(h + 1) * dqk]                       # (bb, T, dqk)
            vh = v[..., h * dv:(h + 1) * dv]                         # (bb, T, dv)
            # contract last dims of both operands -> no explicit k transpose
            s = jnp.einsum('btd,bsd->bts', qh, kh,
                           preferred_element_type=jnp.float32)       # (bb, T, T)
            s = s - jnp.max(s, axis=-1, keepdims=True)               # stable softmax
            p = jnp.exp(s)
            # exact reciprocal: tiny (bb, T, 1) divide, keeps parity with the
            # reference (approx=True is ~1e-3 rel error; fine for pure inference).
            p = p * pl.reciprocal(jnp.sum(p, axis=-1, keepdims=True), approx=False)
            # TODO(synk): with T=8 only 8/128 lanes are live in this softmax;
            # packing heads along lanes would densify it (moot once T >= 128).
            oh = jnp.einsum('bts,bsd->btd', p, vh,
                            preferred_element_type=jnp.float32)      # (bb, T, dv)
            # fused output projection; dv multiple of 8 -> sublane-aligned slice
            wo_h = wo_ref[h * dv:(h + 1) * dv, :]                    # (dv, D)
            o_acc = o_acc + jnp.dot(oh.reshape(bb * T, dv), wo_h,
                                    preferred_element_type=jnp.float32)
        # TODO(synk): cast x/wc/wo (and p, vh) to bf16 with f32 accumulation once
        # T/D grow beyond a few hundred (2x MXU + half the DMA bytes on v6e/v7x).

        # ---- output leaky_relu + residual (late x reload keeps vregs short) --
        out = _leaky_relu(o_acc + bo_ref[...])
        out_ref[...] = (x_ref[...] + out).astype(out_ref.dtype)

    return kernel


def _pick_batch_block(B, T, D, dc, v_dim, requested):
    """Batch elements per grid step.

    Constraints: batch_block divides B; with >1 grid steps the (rows, D) block
    needs rows = batch_block*T to be a multiple of 8 (D is always full width).
    Prefers >=2 grid steps on a 2-TensorCore chip (v7x) so both cores get work,
    and caps the slab so double-buffered x/out tiles plus double-buffered
    weights fit a conservative VMEM budget (v5e 16 MiB scoped / v7x 64 MiB).
    """
    def ok(bb):
        return B % bb == 0 and (bb == B or (bb * T) % 8 == 0)

    def vmem_bytes(bb):
        slabs = 2 * 2 * bb * T * D * 4                  # x + out, double-buffered
        weights = 2 * (D * dc + dc + v_dim * D + D) * 4  # double-buffered weights
        return slabs + weights

    if requested is not None:
        if not ok(requested):
            raise ValueError(
                f"batch_block={requested} must divide B={B} and keep "
                f"batch_block*T a multiple of 8 when the grid has >1 step")
        return requested

    valid = [bb for bb in range(1, B + 1) if ok(bb)]
    min_steps = 2 if (_num_tensorcores() >= 2 and B > 1) else 1
    preferred = [bb for bb in valid
                 if B // bb >= min_steps and vmem_bytes(bb) <= _VMEM_SOFT_BUDGET]
    if preferred:
        return max(preferred)
    fits = [bb for bb in valid if vmem_bytes(bb) <= _VMEM_SOFT_BUDGET]
    return max(fits) if fits else max(valid)


def multi_head_block(x, wc, bc, wo, bo, *, n_head, batch_block=None):
    """Pallas forward of MultiHeadBlock.

    x  : (B, T, D)  float32
    wc : (D, Dc),  bc : (1, Dc)   combined projection (pre-transposed) + bias
    wo : (Vd, D),  bo : (1, D)    output projection  (pre-transposed) + bias
    """
    B, T, D = x.shape
    att_dim = (D // n_head) * n_head
    v_dim = (D // 2) * n_head
    dc = wc.shape[1]
    assert dc == 2 * att_dim + v_dim
    assert wo.shape == (v_dim, D)
    inv_scale = 1.0 / float((D // n_head) ** 0.5)

    bb = _pick_batch_block(B, T, D, dc, v_dim, batch_block)
    rows = bb * T
    grid = (B // bb,)

    kernel = _make_kernel(n_head, att_dim, v_dim, dc, inv_scale, bb, T, D)

    x2 = x.reshape(B * T, D)                  # lane-dense 2-D slab (free reshape)
    # TODO(synk): give the constant-index weight specs pipeline_mode=
    # pl.Buffered(1) to drop their second VMEM copy once weights get large
    # (wc + wo is only ~72 KiB here).
    out2 = pl.pallas_call(
        kernel,
        out_shape=jax.ShapeDtypeStruct((B * T, D), x.dtype),
        grid_spec=pltpu.PrefetchScalarGridSpec(
            num_scalar_prefetch=0,
            grid=grid,
            in_specs=[
                pl.BlockSpec((rows, D), lambda i: (i, 0)),      # x slab
                pl.BlockSpec((D, dc), lambda i: (0, 0)),        # wc (resident)
                pl.BlockSpec((1, dc), lambda i: (0, 0)),        # bc
                pl.BlockSpec((v_dim, D), lambda i: (0, 0)),     # wo (resident)
                pl.BlockSpec((1, D), lambda i: (0, 0)),         # bo
            ],
            out_specs=pl.BlockSpec((rows, D), lambda i: (i, 0)),
        ),
        compiler_params=pltpu.CompilerParams(
            dimension_semantics=("parallel",)),
    )(x2, wc, bc, wo, bo)
    return out2.reshape(B, T, D)


def _reference(x, wc, bc, wo, bo, *, n_head):
    """Pure-JAX mirror of the PyTorch forward, used for validation."""
    B, T, D = x.shape
    att_dim = (D // n_head) * n_head
    dqk = D // n_head
    dv = D // 2
    scale = (D // n_head) ** 0.5

    proj = _leaky_relu(x @ wc + bc)                      # (B, T, Dc)
    q = proj[..., :att_dim]
    k = proj[..., att_dim:2 * att_dim]
    v = proj[..., 2 * att_dim:]

    qh = q.reshape(B, T, n_head, dqk).transpose(0, 2, 1, 3)
    kh = k.reshape(B, T, n_head, dqk).transpose(0, 2, 1, 3)
    vh = v.reshape(B, T, n_head, dv).transpose(0, 2, 1, 3)

    s = jnp.einsum('bhtd,bhsd->bhts', qh, kh) / scale
    p = jax.nn.softmax(s, axis=-1)
    o = jnp.einsum('bhts,bhsd->bhtd', p, vh)             # (B, H, T, dv)
    o = o.transpose(0, 2, 1, 3).reshape(B, T, n_head * dv)
    return x + _leaky_relu(o @ wo + bo)


if __name__ == "__main__":
    # shapes implied by the module: (batch, timesteps, n_input)
    B, T, D, H = 2, 8, 48, 6
    att_dim = (D // H) * H                 # 48
    v_dim = (D // 2) * H                   # 144
    dc = 2 * att_dim + v_dim               # 240 (combined projection width)

    key = jax.random.PRNGKey(0)
    kx, kwc, kbc, kwo, kbo = jax.random.split(key, 5)

    x = jax.random.normal(kx, (B, T, D), dtype=jnp.float32)

    # deterministic xavier-normal init (gain=0.1), matching nn.init.xavier_normal_
    def xavier_normal(k, fan_in, fan_out, gain=0.1):
        std = gain * (2.0 / (fan_in + fan_out)) ** 0.5
        # PyTorch stores weight as (out, in); transpose to (in, out) for x @ W.
        return (std * jax.random.normal(k, (fan_out, fan_in), jnp.float32)).T

    wc = xavier_normal(kwc, D, dc)                                  # (D, Dc)
    wo = xavier_normal(kwo, v_dim, D)                               # (Vd, D)
    # nn.Linear default bias init: U(-1/sqrt(fan_in), 1/sqrt(fan_in))
    bc = jax.random.uniform(kbc, (1, dc), jnp.float32,
                            -1.0 / D ** 0.5, 1.0 / D ** 0.5)
    bo = jax.random.uniform(kbo, (1, D), jnp.float32,
                            -1.0 / v_dim ** 0.5, 1.0 / v_dim ** 0.5)

    fn = jax.jit(functools.partial(multi_head_block, n_head=H))
    out = jax.block_until_ready(fn(x, wc, bc, wo, bo))

    ref = _reference(x, wc, bc, wo, bo, n_head=H)
    # tolerance accounts for the MXU's multi-pass decomposition of f32 matmuls
    # inside Pallas vs. XLA's default matmul precision in the reference; real
    # structural bugs produce errors orders of magnitude above 2e-4.
    np.testing.assert_allclose(np.asarray(out), np.asarray(ref),
                               rtol=2e-4, atol=2e-4)
    print("KERNEL_OK")
</pallas_src>

<mosaic_0001>
module attributes {stable_mosaic.version = 11 : i64} {
  func.func @kernel(%arg0: i32, %arg1: memref<16x48xf32, #tpu.memory_space<vmem>>, %arg2: memref<48x240xf32, #tpu.memory_space<vmem>>, %arg3: memref<1x240xf32, #tpu.memory_space<vmem>>, %arg4: memref<144x48xf32, #tpu.memory_space<vmem>>, %arg5: memref<1x48xf32, #tpu.memory_space<vmem>>, %arg6: memref<16x48xf32, #tpu.memory_space<vmem>>) attributes {dimension_semantics = [#tpu.dimension_semantics<parallel>], iteration_bounds = array<i64: 1>, scalar_prefetch = 0 : i64, scratch_operands = 0 : i64, tpu.core_type = #tpu.core_type<tc>, window_params = [{transform_indices = @transform_0, window_bounds = array<i64: 16, 48>}, {pipeline_mode = #tpu.pipeline_mode<synchronous>, transform_indices = @transform_1, window_bounds = array<i64: 48, 240>}, {pipeline_mode = #tpu.pipeline_mode<synchronous>, transform_indices = @transform_2, window_bounds = array<i64: 1, 240>}, {pipeline_mode = #tpu.pipeline_mode<synchronous>, transform_indices = @transform_3, window_bounds = array<i64: 144, 48>}, {pipeline_mode = #tpu.pipeline_mode<synchronous>, transform_indices = @transform_4, window_bounds = array<i64: 1, 48>}, {transform_indices = @transform_5, window_bounds = array<i64: 16, 48>}]} {
    %c0 = arith.constant 0 : index
    %c0_0 = arith.constant 0 : index
    %0 = vector.load %arg1[%c0, %c0_0] : memref<16x48xf32, #tpu.memory_space<vmem>>, vector<16x48xf32>
    %c0_1 = arith.constant 0 : index
    %c0_2 = arith.constant 0 : index
    %1 = vector.load %arg2[%c0_1, %c0_2] : memref<48x240xf32, #tpu.memory_space<vmem>>, vector<48x240xf32>
    %cst = arith.constant dense<0.000000e+00> : vector<16x240xf32>
    %2 = tpu.matmul %0, %1, %cst {dimension_numbers = #tpu.dot_dimension_numbers<[1], [0], [0], [1], [0, 0, 1, 1], [], []>} : vector<16x48xf32>, vector<48x240xf32>, vector<16x240xf32> -> vector<16x240xf32>
    %c0_3 = arith.constant 0 : index
    %c0_4 = arith.constant 0 : index
    %3 = vector.load %arg3[%c0_3, %c0_4] : memref<1x240xf32, #tpu.memory_space<vmem>>, vector<1x240xf32>
    %4 = vector.broadcast %3 : vector<1x240xf32> to vector<16x240xf32>
    %5 = arith.addf %2, %4 : vector<16x240xf32>
    %cst_5 = arith.constant 0.000000e+00 : f32
    %6 = vector.broadcast %cst_5 : f32 to vector<16x240xf32>
    %7 = arith.cmpf oge, %5, %6 : vector<16x240xf32>
    %cst_6 = arith.constant 0.00999999977 : f32
    %8 = vector.broadcast %cst_6 : f32 to vector<16x240xf32>
    %9 = arith.mulf %8, %5 : vector<16x240xf32>
    %10 = arith.select %7, %5, %9 : vector<16x240xi1>, vector<16x240xf32>
    %11 = vector.shape_cast %10 : vector<16x240xf32> to vector<2x8x240xf32>
    %12 = vector.extract_strided_slice %11 {offsets = [0, 0, 0], sizes = [2, 8, 48], strides = [1, 1, 1]} : vector<2x8x240xf32> to vector<2x8x48xf32>
    %cst_7 = arith.constant 0.353553385 : f32
    %13 = vector.broadcast %cst_7 : f32 to vector<2x8x48xf32>
    %14 = arith.mulf %12, %13 : vector<2x8x48xf32>
    %15 = vector.extract_strided_slice %11 {offsets = [0, 0, 48], sizes = [2, 8, 48], strides = [1, 1, 1]} : vector<2x8x240xf32> to vector<2x8x48xf32>
    %16 = vector.extract_strided_slice %11 {offsets = [0, 0, 96], sizes = [2, 8, 144], strides = [1, 1, 1]} : vector<2x8x240xf32> to vector<2x8x144xf32>
    %cst_8 = arith.constant 0.000000e+00 : f32
    %17 = vector.broadcast %cst_8 : f32 to vector<16x48xf32>
    %18 = vector.extract_strided_slice %14 {offsets = [0, 0, 0], sizes = [2, 8, 8], strides = [1, 1, 1]} : vector<2x8x48xf32> to vector<2x8x8xf32>
    %19 = vector.extract_strided_slice %15 {offsets = [0, 0, 0], sizes = [2, 8, 8], strides = [1, 1, 1]} : vector<2x8x48xf32> to vector<2x8x8xf32>
    %20 = vector.extract_strided_slice %16 {offsets = [0, 0, 0], sizes = [2, 8, 24], strides = [1, 1, 1]} : vector<2x8x144xf32> to vector<2x8x24xf32>
    "tpu.trace_start"() <{level = 10 : i32, message = "btd,bsd->bts"}> : () -> ()
    %cst_9 = arith.constant dense<0.000000e+00> : vector<2x8x8xf32>
    %21 = tpu.matmul %18, %19, %cst_9 {dimension_numbers = #tpu.dot_dimension_numbers<[2], [2], [1], [1], [0, 0, 0, 1, 1, 1], [0], [0]>} : vector<2x8x8xf32>, vector<2x8x8xf32>, vector<2x8x8xf32> -> vector<2x8x8xf32>
    "tpu.trace_stop"() : () -> ()
    %cst_10 = arith.constant dense<0xFF800000> : vector<2x8xf32>
    %22 = vector.multi_reduction <maximumf>, %21, %cst_10 [2] : vector<2x8x8xf32> to vector<2x8xf32>
    %23 = vector.shape_cast %22 : vector<2x8xf32> to vector<2x8x1xf32>
    %24 = vector.broadcast %23 : vector<2x8x1xf32> to vector<2x8x8xf32>
    %25 = arith.subf %21, %24 : vector<2x8x8xf32>
    %26 = math.exp %25 : vector<2x8x8xf32>
    %cst_11 = arith.constant dense<0.000000e+00> : vector<2x8xf32>
    %27 = vector.multi_reduction <add>, %26, %cst_11 [2] : vector<2x8x8xf32> to vector<2x8xf32>
    %28 = vector.shape_cast %27 : vector<2x8xf32> to vector<2x8x1xf32>
    %29 = tpu.reciprocal %28 : vector<2x8x1xf32> -> vector<2x8x1xf32>
    %30 = vector.broadcast %29 : vector<2x8x1xf32> to vector<2x8x8xf32>
    %31 = arith.mulf %26, %30 : vector<2x8x8xf32>
    "tpu.trace_start"() <{level = 10 : i32, message = "bts,bsd->btd"}> : () -> ()
    %cst_12 = arith.constant dense<0.000000e+00> : vector<2x8x24xf32>
    %32 = tpu.matmul %31, %20, %cst_12 {dimension_numbers = #tpu.dot_dimension_numbers<[2], [1], [1], [2], [0, 0, 0, 1, 1, 2], [0], [0]>} : vector<2x8x8xf32>, vector<2x8x24xf32>, vector<2x8x24xf32> -> vector<2x8x24xf32>
    "tpu.trace_stop"() : () -> ()
    %c0_13 = arith.constant 0 : index
    %c0_14 = arith.constant 0 : index
    %33 = vector.load %arg4[%c0_13, %c0_14] : memref<144x48xf32, #tpu.memory_space<vmem>>, vector<24x48xf32>
    %34 = vector.shape_cast %32 : vector<2x8x24xf32> to vector<16x24xf32>
    %cst_15 = arith.constant dense<0.000000e+00> : vector<16x48xf32>
    %35 = tpu.matmul %34, %33, %cst_15 {dimension_numbers = #tpu.dot_dimension_numbers<[1], [0], [0], [1], [0, 0, 1, 1], [], []>} : vector<16x24xf32>, vector<24x48xf32>, vector<16x48xf32> -> vector<16x48xf32>
    %36 = arith.addf %17, %35 : vector<16x48xf32>
    %37 = vector.extract_strided_slice %14 {offsets = [0, 0, 8], sizes = [2, 8, 8], strides = [1, 1, 1]} : vector<2x8x48xf32> to vector<2x8x8xf32>
    %38 = vector.extract_strided_slice %15 {offsets = [0, 0, 8], sizes = [2, 8, 8], strides = [1, 1, 1]} : vector<2x8x48xf32> to vector<2x8x8xf32>
    %39 = vector.extract_strided_slice %16 {offsets = [0, 0, 24], sizes = [2, 8, 24], strides = [1, 1, 1]} : vector<2x8x144xf32> to vector<2x8x24xf32>
    "tpu.trace_start"() <{level = 10 : i32, message = "btd,bsd->bts"}> : () -> ()
    %cst_16 = arith.constant dense<0.000000e+00> : vector<2x8x8xf32>
    %40 = tpu.matmul %37, %38, %cst_16 {dimension_numbers = #tpu.dot_dimension_numbers<[2], [2], [1], [1], [0, 0, 0, 1, 1, 1], [0], [0]>} : vector<2x8x8xf32>, vector<2x8x8xf32>, vector<2x8x8xf32> -> vector<2x8x8xf32>
    "tpu.trace_stop"() : () -> ()
    %cst_17 = arith.constant dense<0xFF800000> : vector<2x8xf32>
    %41 = vector.multi_reduction <maximumf>, %40, %cst_17 [2] : vector<2x8x8xf32> to vector<2x8xf32>
    %42 = vector.shape_cast %41 : vector<2x8xf32> to vector<2x8x1xf32>
    %43 = vector.broadcast %42 : vector<2x8x1xf32> to vector<2x8x8xf32>
    %44 = arith.subf %40, %43 : vector<2x8x8xf32>
    %45 = math.exp %44 : vector<2x8x8xf32>
    %cst_18 = arith.constant dense<0.000000e+00> : vector<2x8xf32>
    %46 = vector.multi_reduction <add>, %45, %cst_18 [2] : vector<2x8x8xf32> to vector<2x8xf32>
    %47 = vector.shape_cast %46 : vector<2x8xf32> to vector<2x8x1xf32>
    %48 = tpu.reciprocal %47 : vector<2x8x1xf32> -> vector<2x8x1xf32>
    %49 = vector.broadcast %48 : vector<2x8x1xf32> to vector<2x8x8xf32>
    %50 = arith.mulf %45, %49 : vector<2x8x8xf32>
    "tpu.trace_start"() <{level = 10 : i32, message = "bts,bsd->btd"}> : () -> ()
    %cst_19 = arith.constant dense<0.000000e+00> : vector<2x8x24xf32>
    %51 = tpu.matmul %50, %39, %cst_19 {dimension_numbers = #tpu.dot_dimension_numbers<[2], [1], [1], [2], [0, 0, 0, 1, 1, 2], [0], [0]>} : vector<2x8x8xf32>, vector<2x8x24xf32>, vector<2x8x24xf32> -> vector<2x8x24xf32>
    "tpu.trace_stop"() : () -> ()
    %c24 = arith.constant 24 : index
    %c0_20 = arith.constant 0 : index
    %52 = vector.load %arg4[%c24, %c0_20] : memref<144x48xf32, #tpu.memory_space<vmem>>, vector<24x48xf32>
    %53 = vector.shape_cast %51 : vector<2x8x24xf32> to vector<16x24xf32>
    %cst_21 = arith.constant dense<0.000000e+00> : vector<16x48xf32>
    %54 = tpu.matmul %53, %52, %cst_21 {dimension_numbers = #tpu.dot_dimension_numbers<[1], [0], [0], [1], [0, 0, 1, 1], [], []>} : vector<16x24xf32>, vector<24x48xf32>, vector<16x48xf32> -> vector<16x48xf32>
    %55 = arith.addf %36, %54 : vector<16x48xf32>
    %56 = vector.extract_strided_slice %14 {offsets = [0, 0, 16], sizes = [2, 8, 8], strides = [1, 1, 1]} : vector<2x8x48xf32> to vector<2x8x8xf32>
    %57 = vector.extract_strided_slice %15 {offsets = [0, 0, 16], sizes = [2, 8, 8], strides = [1, 1, 1]} : vector<2x8x48xf32> to vector<2x8x8xf32>
    %58 = vector.extract_strided_slice %16 {offsets = [0, 0, 48], sizes = [2, 8, 24], strides = [1, 1, 1]} : vector<2x8x144xf32> to vector<2x8x24xf32>
    "tpu.trace_start"() <{level = 10 : i32, message = "btd,bsd->bts"}> : () -> ()
    %cst_22 = arith.constant dense<0.000000e+00> : vector<2x8x8xf32>
    %59 = tpu.matmul %56, %57, %cst_22 {dimension_numbers = #tpu.dot_dimension_numbers<[2], [2], [1], [1], [0, 0, 0, 1, 1, 1], [0], [0]>} : vector<2x8x8xf32>, vector<2x8x8xf32>, vector<2x8x8xf32> -> vector<2x8x8xf32>
    "tpu.trace_stop"() : () -> ()
    %cst_23 = arith.constant dense<0xFF800000> : vector<2x8xf32>
    %60 = vector.multi_reduction <maximumf>, %59, %cst_23 [2] : vector<2x8x8xf32> to vector<2x8xf32>
    %61 = vector.shape_cast %60 : vector<2x8xf32> to vector<2x8x1xf32>
    %62 = vector.broadcast %61 : vector<2x8x1xf32> to vector<2x8x8xf32>
    %63 = arith.subf %59, %62 : vector<2x8x8xf32>
    %64 = math.exp %63 : vector<2x8x8xf32>
    %cst_24 = arith.constant dense<0.000000e+00> : vector<2x8xf32>
    %65 = vector.multi_reduction <add>, %64, %cst_24 [2] : vector<2x8x8xf32> to vector<2x8xf32>
    %66 = vector.shape_cast %65 : vector<2x8xf32> to vector<2x8x1xf32>
    %67 = tpu.reciprocal %66 : vector<2x8x1xf32> -> vector<2x8x1xf32>
    %68 = vector.broadcast %67 : vector<2x8x1xf32> to vector<2x8x8xf32>
    %69 = arith.mulf %64, %68 : vector<2x8x8xf32>
    "tpu.trace_start"() <{level = 10 : i32, message = "bts,bsd->btd"}> : () -> ()
    %cst_25 = arith.constant dense<0.000000e+00> : vector<2x8x24xf32>
    %70 = tpu.matmul %69, %58, %cst_25 {dimension_numbers = #tpu.dot_dimension_numbers<[2], [1], [1], [2], [0, 0, 0, 1, 1, 2], [0], [0]>} : vector<2x8x8xf32>, vector<2x8x24xf32>, vector<2x8x24xf32> -> vector<2x8x24xf32>
    "tpu.trace_stop"() : () -> ()
    %c48 = arith.constant 48 : index
    %c0_26 = arith.constant 0 : index
    %71 = vector.load %arg4[%c48, %c0_26] : memref<144x48xf32, #tpu.memory_space<vmem>>, vector<24x48xf32>
    %72 = vector.shape_cast %70 : vector<2x8x24xf32> to vector<16x24xf32>
    %cst_27 = arith.constant dense<0.000000e+00> : vector<16x48xf32>
    %73 = tpu.matmul %72, %71, %cst_27 {dimension_numbers = #tpu.dot_dimension_numbers<[1], [0], [0], [1], [0, 0, 1, 1], [], []>} : vector<16x24xf32>, vector<24x48xf32>, vector<16x48xf32> -> vector<16x48xf32>
    %74 = arith.addf %55, %73 : vector<16x48xf32>
    %75 = vector.extract_strided_slice %14 {offsets = [0, 0, 24], sizes = [2, 8, 8], strides = [1, 1, 1]} : vector<2x8x48xf32> to vector<2x8x8xf32>
    %76 = vector.extract_strided_slice %15 {offsets = [0, 0, 24], sizes = [2, 8, 8], strides = [1, 1, 1]} : vector<2x8x48xf32> to vector<2x8x8xf32>
    %77 = vector.extract_strided_slice %16 {offsets = [0, 0, 72], sizes = [2, 8, 24], strides = [1, 1, 1]} : vector<2x8x144xf32> to vector<2x8x24xf32>
    "tpu.trace_start"() <{level = 10 : i32, message = "btd,bsd->bts"}> : () -> ()
    %cst_28 = arith.constant dense<0.000000e+00> : vector<2x8x8xf32>
    %78 = tpu.matmul %75, %76, %cst_28 {dimension_numbers = #tpu.dot_dimension_numbers<[2], [2], [1], [1], [0, 0, 0, 1, 1, 1], [0], [0]>} : vector<2x8x8xf32>, vector<2x8x8xf32>, vector<2x8x8xf32> -> vector<2x8x8xf32>
    "tpu.trace_stop"() : () -> ()
    %cst_29 = arith.constant dense<0xFF800000> : vector<2x8xf32>
    %79 = vector.multi_reduction <maximumf>, %78, %cst_29 [2] : vector<2x8x8xf32> to vector<2x8xf32>
    %80 = vector.shape_cast %79 : vector<2x8xf32> to vector<2x8x1xf32>
    %81 = vector.broadcast %80 : vector<2x8x1xf32> to vector<2x8x8xf32>
    %82 = arith.subf %78, %81 : vector<2x8x8xf32>
    %83 = math.exp %82 : vector<2x8x8xf32>
    %cst_30 = arith.constant dense<0.000000e+00> : vector<2x8xf32>
    %84 = vector.multi_reduction <add>, %83, %cst_30 [2] : vector<2x8x8xf32> to vector<2x8xf32>
    %85 = vector.shape_cast %84 : vector<2x8xf32> to vector<2x8x1xf32>
    %86 = tpu.reciprocal %85 : vector<2x8x1xf32> -> vector<2x8x1xf32>
    %87 = vector.broadcast %86 : vector<2x8x1xf32> to vector<2x8x8xf32>
    %88 = arith.mulf %83, %87 : vector<2x8x8xf32>
    "tpu.trace_start"() <{level = 10 : i32, message = "bts,bsd->btd"}> : () -> ()
    %cst_31 = arith.constant dense<0.000000e+00> : vector<2x8x24xf32>
    %89 = tpu.matmul %88, %77, %cst_31 {dimension_numbers = #tpu.dot_dimension_numbers<[2], [1], [1], [2], [0, 0, 0, 1, 1, 2], [0], [0]>} : vector<2x8x8xf32>, vector<2x8x24xf32>, vector<2x8x24xf32> -> vector<2x8x24xf32>
    "tpu.trace_stop"() : () -> ()
    %c72 = arith.constant 72 : index
    %c0_32 = arith.constant 0 : index
    %90 = vector.load %arg4[%c72, %c0_32] : memref<144x48xf32, #tpu.memory_space<vmem>>, vector<24x48xf32>
    %91 = vector.shape_cast %89 : vector<2x8x24xf32> to vector<16x24xf32>
    %cst_33 = arith.constant dense<0.000000e+00> : vector<16x48xf32>
    %92 = tpu.matmul %91, %90, %cst_33 {dimension_numbers = #tpu.dot_dimension_numbers<[1], [0], [0], [1], [0, 0, 1, 1], [], []>} : vector<16x24xf32>, vector<24x48xf32>, vector<16x48xf32> -> vector<16x48xf32>
    %93 = arith.addf %74, %92 : vector<16x48xf32>
    %94 = vector.extract_strided_slice %14 {offsets = [0, 0, 32], sizes = [2, 8, 8], strides = [1, 1, 1]} : vector<2x8x48xf32> to vector<2x8x8xf32>
    %95 = vector.extract_strided_slice %15 {offsets = [0, 0, 32], sizes = [2, 8, 8], strides = [1, 1, 1]} : vector<2x8x48xf32> to vector<2x8x8xf32>
    %96 = vector.extract_strided_slice %16 {offsets = [0, 0, 96], sizes = [2, 8, 24], strides = [1, 1, 1]} : vector<2x8x144xf32> to vector<2x8x24xf32>
    "tpu.trace_start"() <{level = 10 : i32, message = "btd,bsd->bts"}> : () -> ()
    %cst_34 = arith.constant dense<0.000000e+00> : vector<2x8x8xf32>
    %97 = tpu.matmul %94, %95, %cst_34 {dimension_numbers = #tpu.dot_dimension_numbers<[2], [2], [1], [1], [0, 0, 0, 1, 1, 1], [0], [0]>} : vector<2x8x8xf32>, vector<2x8x8xf32>, vector<2x8x8xf32> -> vector<2x8x8xf32>
    "tpu.trace_stop"() : () -> ()
    %cst_35 = arith.constant dense<0xFF800000> : vector<2x8xf32>
    %98 = vector.multi_reduction <maximumf>, %97, %cst_35 [2] : vector<2x8x8xf32> to vector<2x8xf32>
    %99 = vector.shape_cast %98 : vector<2x8xf32> to vector<2x8x1xf32>
    %100 = vector.broadcast %99 : vector<2x8x1xf32> to vector<2x8x8xf32>
    %101 = arith.subf %97, %100 : vector<2x8x8xf32>
    %102 = math.exp %101 : vector<2x8x8xf32>
    %cst_36 = arith.constant dense<0.000000e+00> : vector<2x8xf32>
    %103 = vector.multi_reduction <add>, %102, %cst_36 [2] : vector<2x8x8xf32> to vector<2x8xf32>
    %104 = vector.shape_cast %103 : vector<2x8xf32> to vector<2x8x1xf32>
    %105 = tpu.reciprocal %104 : vector<2x8x1xf32> -> vector<2x8x1xf32>
    %106 = vector.broadcast %105 : vector<2x8x1xf32> to vector<2x8x8xf32>
    %107 = arith.mulf %102, %106 : vector<2x8x8xf32>
    "tpu.trace_start"() <{level = 10 : i32, message = "bts,bsd->btd"}> : () -> ()
    %cst_37 = arith.constant dense<0.000000e+00> : vector<2x8x24xf32>
    %108 = tpu.matmul %107, %96, %cst_37 {dimension_numbers = #tpu.dot_dimension_numbers<[2], [1], [1], [2], [0, 0, 0, 1, 1, 2], [0], [0]>} : vector<2x8x8xf32>, vector<2x8x24xf32>, vector<2x8x24xf32> -> vector<2x8x24xf32>
    "tpu.trace_stop"() : () -> ()
    %c96 = arith.constant 96 : index
    %c0_38 = arith.constant 0 : index
    %109 = vector.load %arg4[%c96, %c0_38] : memref<144x48xf32, #tpu.memory_space<vmem>>, vector<24x48xf32>
    %110 = vector.shape_cast %108 : vector<2x8x24xf32> to vector<16x24xf32>
    %cst_39 = arith.constant dense<0.000000e+00> : vector<16x48xf32>
    %111 = tpu.matmul %110, %109, %cst_39 {dimension_numbers = #tpu.dot_dimension_numbers<[1], [0], [0], [1], [0, 0, 1, 1], [], []>} : vector<16x24xf32>, vector<24x48xf32>, vector<16x48xf32> -> vector<16x48xf32>
    %112 = arith.addf %93, %111 : vector<16x48xf32>
    %113 = vector.extract_strided_slice %14 {offsets = [0, 0, 40], sizes = [2, 8, 8], strides = [1, 1, 1]} : vector<2x8x48xf32> to vector<2x8x8xf32>
    %114 = vector.extract_strided_slice %15 {offsets = [0, 0, 40], sizes = [2, 8, 8], strides = [1, 1, 1]} : vector<2x8x48xf32> to vector<2x8x8xf32>
    %115 = vector.extract_strided_slice %16 {offsets = [0, 0, 120], sizes = [2, 8, 24], strides = [1, 1, 1]} : vector<2x8x144xf32> to vector<2x8x24xf32>
    "tpu.trace_start"() <{level = 10 : i32, message = "btd,bsd->bts"}> : () -> ()
    %cst_40 = arith.constant dense<0.000000e+00> : vector<2x8x8xf32>
    %116 = tpu.matmul %113, %114, %cst_40 {dimension_numbers = #tpu.dot_dimension_numbers<[2], [2], [1], [1], [0, 0, 0, 1, 1, 1], [0], [0]>} : vector<2x8x8xf32>, vector<2x8x8xf32>, vector<2x8x8xf32> -> vector<2x8x8xf32>
    "tpu.trace_stop"() : () -> ()
    %cst_41 = arith.constant dense<0xFF800000> : vector<2x8xf32>
    %117 = vector.multi_reduction <maximumf>, %116, %cst_41 [2] : vector<2x8x8xf32> to vector<2x8xf32>
    %118 = vector.shape_cast %117 : vector<2x8xf32> to vector<2x8x1xf32>
    %119 = vector.broadcast %118 : vector<2x8x1xf32> to vector<2x8x8xf32>
    %120 = arith.subf %116, %119 : vector<2x8x8xf32>
    %121 = math.exp %120 : vector<2x8x8xf32>
    %cst_42 = arith.constant dense<0.000000e+00> : vector<2x8xf32>
    %122 = vector.multi_reduction <add>, %121, %cst_42 [2] : vector<2x8x8xf32> to vector<2x8xf32>
    %123 = vector.shape_cast %122 : vector<2x8xf32> to vector<2x8x1xf32>
    %124 = tpu.reciprocal %123 : vector<2x8x1xf32> -> vector<2x8x1xf32>
    %125 = vector.broadcast %124 : vector<2x8x1xf32> to vector<2x8x8xf32>
    %126 = arith.mulf %121, %125 : vector<2x8x8xf32>
    "tpu.trace_start"() <{level = 10 : i32, message = "bts,bsd->btd"}> : () -> ()
    %cst_43 = arith.constant dense<0.000000e+00> : vector<2x8x24xf32>
    %127 = tpu.matmul %126, %115, %cst_43 {dimension_numbers = #tpu.dot_dimension_numbers<[2], [1], [1], [2], [0, 0, 0, 1, 1, 2], [0], [0]>} : vector<2x8x8xf32>, vector<2x8x24xf32>, vector<2x8x24xf32> -> vector<2x8x24xf32>
    "tpu.trace_stop"() : () -> ()
    %c120 = arith.constant 120 : index
    %c0_44 = arith.constant 0 : index
    %128 = vector.load %arg4[%c120, %c0_44] : memref<144x48xf32, #tpu.memory_space<vmem>>, vector<24x48xf32>
    %129 = vector.shape_cast %127 : vector<2x8x24xf32> to vector<16x24xf32>
    %cst_45 = arith.constant dense<0.000000e+00> : vector<16x48xf32>
    %130 = tpu.matmul %129, %128, %cst_45 {dimension_numbers = #tpu.dot_dimension_numbers<[1], [0], [0], [1], [0, 0, 1, 1], [], []>} : vector<16x24xf32>, vector<24x48xf32>, vector<16x48xf32> -> vector<16x48xf32>
    %131 = arith.addf %112, %130 : vector<16x48xf32>
    %c0_46 = arith.constant 0 : index
    %c0_47 = arith.constant 0 : index
    %132 = vector.load %arg5[%c0_46, %c0_47] : memref<1x48xf32, #tpu.memory_space<vmem>>, vector<1x48xf32>
    %133 = vector.broadcast %132 : vector<1x48xf32> to vector<16x48xf32>
    %134 = arith.addf %131, %133 : vector<16x48xf32>
    %cst_48 = arith.constant 0.000000e+00 : f32
    %135 = vector.broadcast %cst_48 : f32 to vector<16x48xf32>
    %136 = arith.cmpf oge, %134, %135 : vector<16x48xf32>
    %cst_49 = arith.constant 0.00999999977 : f32
    %137 = vector.broadcast %cst_49 : f32 to vector<16x48xf32>
    %138 = arith.mulf %137, %134 : vector<16x48xf32>
    %139 = arith.select %136, %134, %138 : vector<16x48xi1>, vector<16x48xf32>
    %c0_50 = arith.constant 0 : index
    %c0_51 = arith.constant 0 : index
    %140 = vector.load %arg1[%c0_50, %c0_51] : memref<16x48xf32, #tpu.memory_space<vmem>>, vector<16x48xf32>
    %141 = arith.addf %140, %139 : vector<16x48xf32>
    %c0_52 = arith.constant 0 : index
    %c0_53 = arith.constant 0 : index
    %142 = vector.load %arg6[%c0_52, %c0_53] : memref<16x48xf32, #tpu.memory_space<vmem>>, vector<16x48xf32>
    tpu.vector_store %arg6[%c0_52, %c0_53], %141 {strides = array<i32>} : memref<16x48xf32, #tpu.memory_space<vmem>>, vector<16x48xf32>,
    return
  }
  func.func @transform_0(%arg0: i32) -> (i32, i32) {
    %c0_i32 = arith.constant 0 : i32
    %c0_i32_0 = arith.constant 0 : i32
    return %arg0, %c0_i32 : i32, i32
  }
  func.func @transform_1(%arg0: i32) -> (i32, i32) {
    %c0_i32 = arith.constant 0 : i32
    %c0_i32_0 = arith.constant 0 : i32
    %c0_i32_1 = arith.constant 0 : i32
    return %c0_i32, %c0_i32_0 : i32, i32
  }
  func.func @transform_2(%arg0: i32) -> (i32, i32) {
    %c0_i32 = arith.constant 0 : i32
    %c0_i32_0 = arith.constant 0 : i32
    %c0_i32_1 = arith.constant 0 : i32
    return %c0_i32, %c0_i32_0 : i32, i32
  }
  func.func @transform_3(%arg0: i32) -> (i32, i32) {
    %c0_i32 = arith.constant 0 : i32
    %c0_i32_0 = arith.constant 0 : i32
    %c0_i32_1 = arith.constant 0 : i32
    return %c0_i32, %c0_i32_0 : i32, i32
  }
  func.func @transform_4(%arg0: i32) -> (i32, i32) {
    %c0_i32 = arith.constant 0 : i32
    %c0_i32_0 = arith.constant 0 : i32
    %c0_i32_1 = arith.constant 0 : i32
    return %c0_i32, %c0_i32_0 : i32, i32
  }
  func.func @transform_5(%arg0: i32) -> (i32, i32) {
    %c0_i32 = arith.constant 0 : i32
    %c0_i32_0 = arith.constant 0 : i32
    return %arg0, %c0_i32 : i32, i32
  }
}

</mosaic_0001>

<llo_original>
// kernel: multi_head_block.1
$region0: #{multi_head_block.1}
  #allocation0 [shape = 'u32[]', space=smem, size = 0x4, offset = 0x4, fixed_abs, tag = 'smem constant byte address 0x4 - core index']
  #allocation1 [shape = 'u32[144,128]{1,0:T(1,128)}', space=vmem, size = 0x12000, scoped, tag = 'internal scratch']
  %s0 = inlined_call_operand.vmem [shape: f32[16,48], index: 0, kind: input, shape index: {}]
  %s1 = inlined_call_operand.vmem [shape: f32[48,240], index: 1, kind: input, shape index: {}]
  %s2 = inlined_call_operand.vmem [shape: f32[1,240], index: 2, kind: input, shape index: {}]
  %s3 = inlined_call_operand.vmem [shape: f32[144,48], index: 3, kind: input, shape index: {}]
  %s4 = inlined_call_operand.vmem [shape: f32[1,48], index: 4, kind: input, shape index: {}]
  %s5 = inlined_call_operand.hbm [shape: f32[16,48], index: 5, kind: output, shape index: {}]
  %s6 = sld [smem:[#allocation0]]
  $region30: #{multi_head_block.1} parent=0
    _
  %s8 = ssub.s32 1, %s6
  %s9 = scalar_select 0, %s8, %s6
  $region1: #{multi_head_block.1} parent=0
    #allocation2 [shape = 'u8[8192]{0}', space=vmem, size = 0x2000, scoped, tag = 'output window, operand 0, single buffered']
    #allocation3 [shape = 's32[1]{0}', space=sflag, size = 0x4, scoped, tag = 'scoped memory for multi_head_block.1']
    %10 = vsyncpa [#allocation3], 0
    // Predicated region
    $region2: #{multi_head_block.1} parent=1 // pred_check
      _
    $region3: #{multi_head_block.1} parent=1 // pred_check_branch
      %12 = sbr.rel (0) target = $region5
    $region4: #{multi_head_block.1} parent=1 // pred_region
      _
    $region5: #{multi_head_block.1} parent=1 // pred_fallthru
      _
    // Predicated region
    $region6: #{multi_head_block.1} parent=1 // pred_check
      _
    $region7: #{multi_head_block.1} parent=1 // pred_check_branch
      %14 = sbr.rel (0) target = $region9
    $region8: #{multi_head_block.1} parent=1 // pred_region
      _
    $region9: #{multi_head_block.1} parent=1 // pred_fallthru
      _
    // Predicated region
    $region10: #{multi_head_block.1} parent=1 // pred_check
      _
    $region11: #{multi_head_block.1} parent=1 // pred_check_branch
      %16 = sbr.rel (0) target = $region13
    $region12: #{multi_head_block.1} parent=1 // pred_region
      _
    $region13: #{multi_head_block.1} parent=1 // pred_fallthru
      _
    // Predicated region
    $region14: #{multi_head_block.1} parent=1 // pred_check
      _
    $region15: #{multi_head_block.1} parent=1 // pred_check_branch
      %18 = sbr.rel (0) target = $region17
    $region16: #{multi_head_block.1} parent=1 // pred_region
      _
    $region17: #{multi_head_block.1} parent=1 // pred_fallthru
      _
    // Predicated region
    $region18: #{multi_head_block.1} parent=1 // pred_check
      _
    $region19: #{multi_head_block.1} parent=1 // pred_check_branch
      %20 = sbr.rel (0) target = $region21
    $region20: #{multi_head_block.1} parent=1 // pred_region
      _
    $region21: #{multi_head_block.1} parent=1 // pred_fallthru
      _
    %v21 = vld [vmem:[%s0] sm:$0xff]
    %v22 = vld [vmem:[%s0 + $0x8] sm:$0xff]
    %v23 = vld [vmem:[%s1] sm:$0xff]
    %v24 = vld [vmem:[%s1 + $0x8] sm:$0xff]
    %v25 = vld [vmem:[%s1 + $0x10] sm:$0xff]
    %v26 = vld [vmem:[%s1 + $0x18] sm:$0xff]
    %v27 = vld [vmem:[%s1 + $0x20] sm:$0xff]
    %v28 = vld [vmem:[%s1 + $0x28] sm:$0xff]
    %v29 = vld [vmem:[%s1 + $0x30] sm:$0xff]
    %v30 = vld [vmem:[%s1 + $0x38] sm:$0xff]
    %v31 = vld [vmem:[%s1 + $0x40] sm:$0xff]
    %v32 = vld [vmem:[%s1 + $0x48] sm:$0xff]
    %v33 = vld [vmem:[%s1 + $0x50] sm:$0xff]
    %v34 = vld [vmem:[%s1 + $0x58] sm:$0xff]
    %v35 = vld [vmem:[%s2] sm:$0x3]
    %v37 = vlaneseq
    %v38 = vshrl.u32 %v37, 7
    %v39 = vsub.s32 0, %v38
    %v40 = vrot.slane %v35, %v39
    %v41 = vlaneseq
    %v42 = vshrl.u32 %v41, 7
    %v43 = vsub.s32 1, %v42
    %v44 = vrot.slane %v35, %v43
    %vm47 = vcmask 392192
    %v49 = vsel %vm47, %v21, 0
    %v52 = vsel %vm47, %v22, 0
    %54 = vmatprep.subr.mxu0 %v24
    %55 = vmatpush1.msra.mxu0 %v23
    %56 = vmatprep.subr.mxu0 %v26
    %57 = vmatpush1.msra.mxu0 %v25
    %58 = vmatprep.subr.mxu0 %v28
    %59 = vmatpush1.msra.mxu0 %v27
    %60 = vmatprep.subr.mxu0 %v30
    %61 = vmatpush1.msra.mxu0 %v29
    %62 = vmatprep.subr.mxu0 %v32
    %63 = vmatpush1.msra.mxu0 %v31
    %64 = vmatprep.subr.mxu0 %v34
    %65 = vmatpush1.msra.mxu0 %v33
    %66 = vmatprep.subr.mxu0 0.0
    %67 = vmatpush1.msra.mxu0 0.0
    %68 = vmatprep.subr.mxu0 0.0
    %69 = vmatpush1.msra.mxu0 0.0
    %70 = vmatprep.subr.mxu0 0.0
    %71 = vmatpush1.msra.mxu0 0.0
    %72 = vmatprep.subr.mxu0 0.0
    %73 = vmatpush1.msra.mxu0 0.0
    %74 = vmatprep.subr.mxu0 0.0
    %75 = vmatpush1.msra.mxu0 0.0
    %76 = vmatprep.subr.mxu0 0.0
    %77 = vmatpush1.msra.mxu0 0.0
    %78 = vmatprep.subr.mxu0 0.0
    %79 = vmatpush1.msra.mxu0 0.0
    %80 = vmatprep.subr.mxu0 0.0
    %81 = vmatpush1.msra.mxu0 0.0
    %82 = vmatprep.subr.mxu0 0.0
    %83 = vmatpush1.msra.mxu0 0.0
    %84 = vmatprep.subr.mxu0 0.0
    %85 = vmatpush1.msra.mxu0 0.0
    %86 = vmatprep.subr.mxu0 0.0
    %87 = vmatpush1.msra.mxu0 0.0
    %88 = vmatprep.subr.mxu0 0.0
    %89 = vmatpush1.msra.mxu0 0.0
    %90 = vmatprep.subr.mxu0 0.0
    %91 = vmatpush1.msra.mxu0 0.0
    %92 = vmatprep.subr.mxu0 0.0
    %93 = vmatpush1.msra.mxu0 0.0
    %94 = vmatprep.subr.mxu0 0.0
    %95 = vmatpush1.msra.mxu0 0.0
    %96 = vmatprep.subr.mxu0 0.0
    %97 = vmatpush1.msra.mxu0 0.0
    %98 = vmatprep.subr.mxu0 0.0
    %99 = vmatpush1.msra.mxu0 0.0
    %100 = vmatprep.subr.mxu0 0.0
    %101 = vmatpush1.msra.mxu0 0.0
    %102 = vmatprep.subr.mxu0 0.0
    %103 = vmatpush1.msra.mxu0 0.0
    %104 = vmatprep.subr.mxu0 0.0
    %105 = vmatpush1.msra.mxu0 0.0
    %106 = vmatprep.subr.mxu0 0.0
    %107 = vmatpush1.msra.mxu0 0.0
    %108 = vmatprep.subr.mxu0 0.0
    %109 = vmatpush1.msra.mxu0 0.0
    %110 = vmatprep.subr.mxu0 0.0
    %111 = vmatpush1.msra.mxu0 0.0
    %112 = vmatprep.subr.mxu0 0.0
    %113 = vmatpush1.msra.mxu0 0.0
    %114 = vmatprep.subr.mxu0 0.0
    %115 = vmatpush1.msra.mxu0 0.0
    %116 = vmatprep.subr.mxu0 0.0
    %117 = vmatpush1.msra.mxu0 0.0
    %118 = vmatprep.mubr.f32.mxu0 0.0
    %119 = vmatmul.mubr.f32.gmra.mrb[0].mxu0 %v49
    %v120 = vpop.f32.mrb[0].mxu0
    %v121 = vadd.f32 %v40, %v120
    %v122 = vpop.f32.mrb[0].mxu0
    %v123 = vadd.f32 %v44, %v122
    %124 = vmatprep.mubr.f32.mxu0 0.0
    %125 = vmatmul.mubr.f32.gmra.mrb[0].mxu0 %v52
    %v126 = vpop.f32.mrb[0].mxu0
    %v127 = vadd.f32 %v40, %v126
    %v128 = vpop.f32.mrb[0].mxu0
    %v129 = vadd.f32 %v44, %v128
    %130 = vdwg.mxu0
    %vm131 = vcmp.ge.f32.partialorder %v121, 0.0
    %vm132 = vcmp.ge.f32.partialorder %v123, 0.0
    %vm133 = vcmp.ge.f32.partialorder %v127, 0.0
    %vm134 = vcmp.ge.f32.partialorder %v129, 0.0
    %v135 = vmul.f32 %v121, 0.01
    %v136 = vmul.f32 %v123, 0.01
    %v137 = vmul.f32 %v127, 0.01
    %v138 = vmul.f32 %v129, 0.01
    %v139 = vsel %vm131, %v121, %v135
    %v140 = vsel %vm132, %v123, %v136
    %v141 = vsel %vm133, %v127, %v137
    %v142 = vsel %vm134, %v129, %v138
    %v143 = vmul.f32 %v139, 0.35355338
    %v144 = vmul.f32 %v141, 0.35355338
    %146 = vrot.lane.b32.xlu0 %v139, 80
    %v147 = vpop.permute.xlu0 %146
    %vm148 = vcmask 64512
    %v150 = vsel %vm148, %v143, 0
    %v152 = vsel %vm148, %v147, 0
    %154 = vmatprep.subr.mxu0 0.0
    %155 = vmatpush1.xpose.msra.mxu0 %v152
    %156 = vmatprep.subr.mxu0 0.0
    %157 = vmatpush1.xpose.msra.mxu0 0.0
    %158 = vmatprep.subr.mxu0 0.0
    %159 = vmatpush1.xpose.msra.mxu0 0.0
    %160 = vmatprep.subr.mxu0 0.0
    %161 = vmatpush1.xpose.msra.mxu0 0.0
    %162 = vmatprep.subr.mxu0 0.0
    %163 = vmatpush1.xpose.msra.mxu0 0.0
    %164 = vmatprep.subr.mxu0 0.0
    %165 = vmatpush1.xpose.msra.mxu0 0.0
    %166 = vmatprep.subr.mxu0 0.0
    %167 = vmatpush1.xpose.msra.mxu0 0.0
    %168 = vmatprep.subr.mxu0 0.0
    %169 = vmatpush1.xpose.msra.mxu0 0.0
    %170 = vmatprep.subr.mxu0 0.0
    %171 = vmatpush1.xpose.msra.mxu0 0.0
    %172 = vmatprep.subr.mxu0 0.0
    %173 = vmatpush1.xpose.msra.mxu0 0.0
    %174 = vmatprep.subr.mxu0 0.0
    %175 = vmatpush1.xpose.msra.mxu0 0.0
    %176 = vmatprep.subr.mxu0 0.0
    %177 = vmatpush1.xpose.msra.mxu0 0.0
    %178 = vmatprep.subr.mxu0 0.0
    %179 = vmatpush1.xpose.msra.mxu0 0.0
    %180 = vmatprep.subr.mxu0 0.0
    %181 = vmatpush1.xpose.msra.mxu0 0.0
    %182 = vmatprep.subr.mxu0 0.0
    %183 = vmatpush1.xpose.msra.mxu0 0.0
    %184 = vmatprep.subr.mxu0 0.0
    %185 = vmatpush1.xpose.msra.mxu0 0.0
    %186 = vmatprep.subr.mxu0 0.0
    %187 = vmatpush1.xpose.msra.mxu0 0.0
    %188 = vmatprep.subr.mxu0 0.0
    %189 = vmatpush1.xpose.msra.mxu0 0.0
    %190 = vmatprep.subr.mxu0 0.0
    %191 = vmatpush1.xpose.msra.mxu0 0.0
    %192 = vmatprep.subr.mxu0 0.0
    %193 = vmatpush1.xpose.msra.mxu0 0.0
    %194 = vmatprep.subr.mxu0 0.0
    %195 = vmatpush1.xpose.msra.mxu0 0.0
    %196 = vmatprep.subr.mxu0 0.0
    %197 = vmatpush1.xpose.msra.mxu0 0.0
    %198 = vmatprep.subr.mxu0 0.0
    %199 = vmatpush1.xpose.msra.mxu0 0.0
    %200 = vmatprep.subr.mxu0 0.0
    %201 = vmatpush1.xpose.msra.mxu0 0.0
    %202 = vmatprep.subr.mxu0 0.0
    %203 = vmatpush1.xpose.msra.mxu0 0.0
    %204 = vmatprep.subr.mxu0 0.0
    %205 = vmatpush1.xpose.msra.mxu0 0.0
    %206 = vmatprep.subr.mxu0 0.0
    %207 = vmatpush1.xpose.msra.mxu0 0.0
    %208 = vmatprep.subr.mxu0 0.0
    %209 = vmatpush1.xpose.msra.mxu0 0.0
    %210 = vmatprep.subr.mxu0 0.0
    %211 = vmatpush1.xpose.msra.mxu0 0.0
    %212 = vmatprep.subr.mxu0 0.0
    %213 = vmatpush1.xpose.msra.mxu0 0.0
    %214 = vmatprep.subr.mxu0 0.0
    %215 = vmatpush1.xpose.msra.mxu0 0.0
    %216 = vmatprep.subr.mxu0 0.0
    %217 = vmatpush1.xpose.msra.mxu0 0.0
    %218 = vmatprep.mubr.f32.mxu0 0.0
    %219 = vmatmul.mubr.f32.gmra.mrb[0].mxu0 %v150
    %v220 = vpop.f32.mrb[0].mxu0
    %v221 = vadd.f32 0.0, %v220
    %v222 = vpop.f32.mrb[0].mxu0
    %223 = vdwg.mxu0
    %225 = vrot.lane.b32.xlu0 %v141, 80
    %v226 = vpop.permute.xlu0 %225
    %v228 = vsel %vm148, %v144, 0
    %v230 = vsel %vm148, %v226, 0
    %232 = vmatprep.subr.mxu0 0.0
    %233 = vmatpush1.xpose.msra.mxu0 %v230
    %234 = vmatprep.subr.mxu0 0.0
    %235 = vmatpush1.xpose.msra.mxu0 0.0
    %236 = vmatprep.subr.mxu0 0.0
    %237 = vmatpush1.xpose.msra.mxu0 0.0
    %238 = vmatprep.subr.mxu0 0.0
    %239 = vmatpush1.xpose.msra.mxu0 0.0
    %240 = vmatprep.subr.mxu0 0.0
    %241 = vmatpush1.xpose.msra.mxu0 0.0
    %242 = vmatprep.subr.mxu0 0.0
    %243 = vmatpush1.xpose.msra.mxu0 0.0
    %244 = vmatprep.subr.mxu0 0.0
    %245 = vmatpush1.xpose.msra.mxu0 0.0
    %246 = vmatprep.subr.mxu0 0.0
    %247 = vmatpush1.xpose.msra.mxu0 0.0
    %248 = vmatprep.subr.mxu0 0.0
    %249 = vmatpush1.xpose.msra.mxu0 0.0
    %250 = vmatprep.subr.mxu0 0.0
    %251 = vmatpush1.xpose.msra.mxu0 0.0
    %252 = vmatprep.subr.mxu0 0.0
    %253 = vmatpush1.xpose.msra.mxu0 0.0
    %254 = vmatprep.subr.mxu0 0.0
    %255 = vmatpush1.xpose.msra.mxu0 0.0
    %256 = vmatprep.subr.mxu0 0.0
    %257 = vmatpush1.xpose.msra.mxu0 0.0
    %258 = vmatprep.subr.mxu0 0.0
    %259 = vmatpush1.xpose.msra.mxu0 0.0
    %260 = vmatprep.subr.mxu0 0.0
    %261 = vmatpush1.xpose.msra.mxu0 0.0
    %262 = vmatprep.subr.mxu0 0.0
    %263 = vmatpush1.xpose.msra.mxu0 0.0
    %264 = vmatprep.subr.mxu0 0.0
    %265 = vmatpush1.xpose.msra.mxu0 0.0
    %266 = vmatprep.subr.mxu0 0.0
    %267 = vmatpush1.xpose.msra.mxu0 0.0
    %268 = vmatprep.subr.mxu0 0.0
    %269 = vmatpush1.xpose.msra.mxu0 0.0
    %270 = vmatprep.subr.mxu0 0.0
    %271 = vmatpush1.xpose.msra.mxu0 0.0
    %272 = vmatprep.subr.mxu0 0.0
    %273 = vmatpush1.xpose.msra.mxu0 0.0
    %274 = vmatprep.subr.mxu0 0.0
    %275 = vmatpush1.xpose.msra.mxu0 0.0
    %276 = vmatprep.subr.mxu0 0.0
    %277 = vmatpush1.xpose.msra.mxu0 0.0
    %278 = vmatprep.subr.mxu0 0.0
    %279 = vmatpush1.xpose.msra.mxu0 0.0
    %280 = vmatprep.subr.mxu0 0.0
    %281 = vmatpush1.xpose.msra.mxu0 0.0
    %282 = vmatprep.subr.mxu0 0.0
    %283 = vmatpush1.xpose.msra.mxu0 0.0
    %284 = vmatprep.subr.mxu0 0.0
    %285 = vmatpush1.xpose.msra.mxu0 0.0
    %286 = vmatprep.subr.mxu0 0.0
    %287 = vmatpush1.xpose.msra.mxu0 0.0
    %288 = vmatprep.subr.mxu0 0.0
    %289 = vmatpush1.xpose.msra.mxu0 0.0
    %290 = vmatprep.subr.mxu0 0.0
    %291 = vmatpush1.xpose.msra.mxu0 0.0
    %292 = vmatprep.subr.mxu0 0.0
    %293 = vmatpush1.xpose.msra.mxu0 0.0
    %294 = vmatprep.subr.mxu0 0.0
    %295 = vmatpush1.xpose.msra.mxu0 0.0
    %296 = vmatprep.mubr.f32.mxu0 0.0
    %297 = vmatmul.mubr.f32.gmra.mrb[0].mxu0 %v228
    %v298 = vpop.f32.mrb[0].mxu0
    %v299 = vadd.f32 0.0, %v298
    %v300 = vpop.f32.mrb[0].mxu0
    %301 = vdwg.mxu0
    %v302 = vsel %vm148, %v221, -inf
    %303 = vmax.xlane.f32.xlu0 %v302
    %v304 = vpop.xlane.xlu0 %303
    %v305 = vsel %vm148, %v299, -inf
    %306 = vmax.xlane.f32.xlu0 %v305
    %v307 = vpop.xlane.xlu0 %306
    %v308 = vsub.f32 %v221, %v304
    %v309 = vsub.f32 %v299, %v307
    %v310 = vmul.f32 %v308, 1.442695
    %v311 = vpow.pop %v310
    %v312 = vmul.f32 %v309, 1.442695
    %v313 = vpow.pop %v312
    %v314 = vsel %vm148, %v311, 0.0
    %315 = vadd.xlane.f32.xlu0 %v314
    %v316 = vpop.xlane.xlu0 %315
    %v317 = vsel %vm148, %v313, 0.0
    %318 = vadd.xlane.f32.xlu0 %v317
    %v319 = vpop.xlane.xlu0 %318
    %v320 = vrcp.pop %v316
    %v321 = vrcp.pop %v319
    %v322 = vmul.f32 %v311, %v320
    %v323 = vmul.f32 %v313, %v321
    %324 = vrot.lane.b32.xlu0 %v139, 32
    %v325 = vpop.permute.xlu0 %324
    %v328 = vsel %vm148, %v322, 0
    %330 = vmatprep.subr.mxu0 0.0
    %331 = vmatpush1.msra.mxu0 %v325
    %332 = vmatprep.subr.mxu0 0.0
    %333 = vmatpush1.msra.mxu0 0.0
    %334 = vmatprep.subr.mxu0 0.0
    %335 = vmatpush1.msra.mxu0 0.0
    %336 = vmatprep.subr.mxu0 0.0
    %337 = vmatpush1.msra.mxu0 0.0
    %338 = vmatprep.subr.mxu0 0.0
    %339 = vmatpush1.msra.mxu0 0.0
    %340 = vmatprep.subr.mxu0 0.0
    %341 = vmatpush1.msra.mxu0 0.0
    %342 = vmatprep.subr.mxu0 0.0
    %343 = vmatpush1.msra.mxu0 0.0
    %344 = vmatprep.subr.mxu0 0.0
    %345 = vmatpush1.msra.mxu0 0.0
    %346 = vmatprep.subr.mxu0 0.0
    %347 = vmatpush1.msra.mxu0 0.0
    %348 = vmatprep.subr.mxu0 0.0
    %349 = vmatpush1.msra.mxu0 0.0
    %350 = vmatprep.subr.mxu0 0.0
    %351 = vmatpush1.msra.mxu0 0.0
    %352 = vmatprep.subr.mxu0 0.0
    %353 = vmatpush1.msra.mxu0 0.0
    %354 = vmatprep.subr.mxu0 0.0
    %355 = vmatpush1.msra.mxu0 0.0
    %356 = vmatprep.subr.mxu0 0.0
    %357 = vmatpush1.msra.mxu0 0.0
    %358 = vmatprep.subr.mxu0 0.0
    %359 = vmatpush1.msra.mxu0 0.0
    %360 = vmatprep.subr.mxu0 0.0
    %361 = vmatpush1.msra.mxu0 0.0
    %362 = vmatprep.subr.mxu0 0.0
    %363 = vmatpush1.msra.mxu0 0.0
    %364 = vmatprep.subr.mxu0 0.0
    %365 = vmatpush1.msra.mxu0 0.0
    %366 = vmatprep.subr.mxu0 0.0
    %367 = vmatpush1.msra.mxu0 0.0
    %368 = vmatprep.subr.mxu0 0.0
    %369 = vmatpush1.msra.mxu0 0.0
    %370 = vmatprep.subr.mxu0 0.0
    %371 = vmatpush1.msra.mxu0 0.0
    %372 = vmatprep.subr.mxu0 0.0
    %373 = vmatpush1.msra.mxu0 0.0
    %374 = vmatprep.subr.mxu0 0.0
    %375 = vmatpush1.msra.mxu0 0.0
    %376 = vmatprep.subr.mxu0 0.0
    %377 = vmatpush1.msra.mxu0 0.0
    %378 = vmatprep.subr.mxu0 0.0
    %379 = vmatpush1.msra.mxu0 0.0
    %380 = vmatprep.subr.mxu0 0.0
    %381 = vmatpush1.msra.mxu0 0.0
    %382 = vmatprep.subr.mxu0 0.0
    %383 = vmatpush1.msra.mxu0 0.0
    %384 = vmatprep.subr.mxu0 0.0
    %385 = vmatpush1.msra.mxu0 0.0
    %386 = vmatprep.subr.mxu0 0.0
    %387 = vmatpush1.msra.mxu0 0.0
    %388 = vmatprep.subr.mxu0 0.0
    %389 = vmatpush1.msra.mxu0 0.0
    %390 = vmatprep.subr.mxu0 0.0
    %391 = vmatpush1.msra.mxu0 0.0
    %392 = vmatprep.subr.mxu0 0.0
    %393 = vmatpush1.msra.mxu0 0.0
    %394 = vmatprep.mubr.f32.mxu0 0.0
    %395 = vmatmul.mubr.f32.gmra.mrb[0].mxu0 %v328
    %v396 = vpop.f32.mrb[0].mxu0
    %v397 = vadd.f32 0.0, %v396
    %v398 = vpop.f32.mrb[0].mxu0
    %399 = vdwg.mxu0
    %400 = vrot.lane.b32.xlu0 %v141, 32
    %v401 = vpop.permute.xlu0 %400
    %v404 = vsel %vm148, %v323, 0
    %406 = vmatprep.subr.mxu0 0.0
    %407 = vmatpush1.msra.mxu0 %v401
    %408 = vmatprep.subr.mxu0 0.0
    %409 = vmatpush1.msra.mxu0 0.0
    %410 = vmatprep.subr.mxu0 0.0
    %411 = vmatpush1.msra.mxu0 0.0
    %412 = vmatprep.subr.mxu0 0.0
    %413 = vmatpush1.msra.mxu0 0.0
    %414 = vmatprep.subr.mxu0 0.0
    %415 = vmatpush1.msra.mxu0 0.0
    %416 = vmatprep.subr.mxu0 0.0
    %417 = vmatpush1.msra.mxu0 0.0
    %418 = vmatprep.subr.mxu0 0.0
    %419 = vmatpush1.msra.mxu0 0.0
    %420 = vmatprep.subr.mxu0 0.0
    %421 = vmatpush1.msra.mxu0 0.0
    %422 = vmatprep.subr.mxu0 0.0
    %423 = vmatpush1.msra.mxu0 0.0
    %424 = vmatprep.subr.mxu0 0.0
    %425 = vmatpush1.msra.mxu0 0.0
    %426 = vmatprep.subr.mxu0 0.0
    %427 = vmatpush1.msra.mxu0 0.0
    %428 = vmatprep.subr.mxu0 0.0
    %429 = vmatpush1.msra.mxu0 0.0
    %430 = vmatprep.subr.mxu0 0.0
    %431 = vmatpush1.msra.mxu0 0.0
    %432 = vmatprep.subr.mxu0 0.0
    %433 = vmatpush1.msra.mxu0 0.0
    %434 = vmatprep.subr.mxu0 0.0
    %435 = vmatpush1.msra.mxu0 0.0
    %436 = vmatprep.subr.mxu0 0.0
    %437 = vmatpush1.msra.mxu0 0.0
    %438 = vmatprep.subr.mxu0 0.0
    %439 = vmatpush1.msra.mxu0 0.0
    %440 = vmatprep.subr.mxu0 0.0
    %441 = vmatpush1.msra.mxu0 0.0
    %442 = vmatprep.subr.mxu0 0.0
    %443 = vmatpush1.msra.mxu0 0.0
    %444 = vmatprep.subr.mxu0 0.0
    %445 = vmatpush1.msra.mxu0 0.0
    %446 = vmatprep.subr.mxu0 0.0
    %447 = vmatpush1.msra.mxu0 0.0
    %448 = vmatprep.subr.mxu0 0.0
    %449 = vmatpush1.msra.mxu0 0.0
    %450 = vmatprep.subr.mxu0 0.0
    %451 = vmatpush1.msra.mxu0 0.0
    %452 = vmatprep.subr.mxu0 0.0
    %453 = vmatpush1.msra.mxu0 0.0
    %454 = vmatprep.subr.mxu0 0.0
    %455 = vmatpush1.msra.mxu0 0.0
    %456 = vmatprep.subr.mxu0 0.0
    %457 = vmatpush1.msra.mxu0 0.0
    %458 = vmatprep.subr.mxu0 0.0
    %459 = vmatpush1.msra.mxu0 0.0
    %460 = vmatprep.subr.mxu0 0.0
    %461 = vmatpush1.msra.mxu0 0.0
    %462 = vmatprep.subr.mxu0 0.0
    %463 = vmatpush1.msra.mxu0 0.0
    %464 = vmatprep.subr.mxu0 0.0
    %465 = vmatpush1.msra.mxu0 0.0
    %466 = vmatprep.subr.mxu0 0.0
    %467 = vmatpush1.msra.mxu0 0.0
    %468 = vmatprep.subr.mxu0 0.0
    %469 = vmatpush1.msra.mxu0 0.0
    %470 = vmatprep.mubr.f32.mxu0 0.0
    %471 = vmatmul.mubr.f32.gmra.mrb[0].mxu0 %v404
    %v472 = vpop.f32.mrb[0].mxu0
    %v473 = vadd.f32 0.0, %v472
    %v474 = vpop.f32.mrb[0].mxu0
    %475 = vdwg.mxu0
    %v476 = vld [vmem:[%s3] sm:$0xff]
    %v477 = vld [vmem:[%s3 + $0x8] sm:$0xff]
    %v478 = vld [vmem:[%s3 + $0x10] sm:$0xff]
    %479 = vrot.lane.b32.xlu0 %v143, 120
    %v480 = vpop.permute.xlu0 %479
    %481 = vrot.lane.b32.xlu0 %v139, 72
    %v482 = vpop.permute.xlu0 %481
    %v483 = vsel %vm148, %v480, 0
    %v485 = vsel %vm148, %v482, 0
    %487 = vmatprep.subr.mxu0 0.0
    %488 = vmatpush1.xpose.msra.mxu0 %v485
    %489 = vmatprep.subr.mxu0 0.0
    %490 = vmatpush1.xpose.msra.mxu0 0.0
    %491 = vmatprep.subr.mxu0 0.0
    %492 = vmatpush1.xpose.msra.mxu0 0.0
    %493 = vmatprep.subr.mxu0 0.0
    %494 = vmatpush1.xpose.msra.mxu0 0.0
    %495 = vmatprep.subr.mxu0 0.0
    %496 = vmatpush1.xpose.msra.mxu0 0.0
    %497 = vmatprep.subr.mxu0 0.0
    %498 = vmatpush1.xpose.msra.mxu0 0.0
    %499 = vmatprep.subr.mxu0 0.0
    %500 = vmatpush1.xpose.msra.mxu0 0.0
    %501 = vmatprep.subr.mxu0 0.0
    %502 = vmatpush1.xpose.msra.mxu0 0.0
    %503 = vmatprep.subr.mxu0 0.0
    %504 = vmatpush1.xpose.msra.mxu0 0.0
    %505 = vmatprep.subr.mxu0 0.0
    %506 = vmatpush1.xpose.msra.mxu0 0.0
    %507 = vmatprep.subr.mxu0 0.0
    %508 = vmatpush1.xpose.msra.mxu0 0.0
    %509 = vmatprep.subr.mxu0 0.0
    %510 = vmatpush1.xpose.msra.mxu0 0.0
    %511 = vmatprep.subr.mxu0 0.0
    %512 = vmatpush1.xpose.msra.mxu0 0.0
    %513 = vmatprep.subr.mxu0 0.0
    %514 = vmatpush1.xpose.msra.mxu0 0.0
    %515 = vmatprep.subr.mxu0 0.0
    %516 = vmatpush1.xpose.msra.mxu0 0.0
    %517 = vmatprep.subr.mxu0 0.0
    %518 = vmatpush1.xpose.msra.mxu0 0.0
    %519 = vmatprep.subr.mxu0 0.0
    %520 = vmatpush1.xpose.msra.mxu0 0.0
    %521 = vmatprep.subr.mxu0 0.0
    %522 = vmatpush1.xpose.msra.mxu0 0.0
    %523 = vmatprep.subr.mxu0 0.0
    %524 = vmatpush1.xpose.msra.mxu0 0.0
    %525 = vmatprep.subr.mxu0 0.0
    %526 = vmatpush1.xpose.msra.mxu0 0.0
    %527 = vmatprep.subr.mxu0 0.0
    %528 = vmatpush1.xpose.msra.mxu0 0.0
    %529 = vmatprep.subr.mxu0 0.0
    %530 = vmatpush1.xpose.msra.mxu0 0.0
    %531 = vmatprep.subr.mxu0 0.0
    %532 = vmatpush1.xpose.msra.mxu0 0.0
    %533 = vmatprep.subr.mxu0 0.0
    %534 = vmatpush1.xpose.msra.mxu0 0.0
    %535 = vmatprep.subr.mxu0 0.0
    %536 = vmatpush1.xpose.msra.mxu0 0.0
    %537 = vmatprep.subr.mxu0 0.0
    %538 = vmatpush1.xpose.msra.mxu0 0.0
    %539 = vmatprep.subr.mxu0 0.0
    %540 = vmatpush1.xpose.msra.mxu0 0.0
    %541 = vmatprep.subr.mxu0 0.0
    %542 = vmatpush1.xpose.msra.mxu0 0.0
    %543 = vmatprep.subr.mxu0 0.0
    %544 = vmatpush1.xpose.msra.mxu0 0.0
    %545 = vmatprep.subr.mxu0 0.0
    %546 = vmatpush1.xpose.msra.mxu0 0.0
    %547 = vmatprep.subr.mxu0 0.0
    %548 = vmatpush1.xpose.msra.mxu0 0.0
    %549 = vmatprep.subr.mxu0 0.0
    %550 = vmatpush1.xpose.msra.mxu0 0.0
    %551 = vmatprep.mubr.f32.mxu0 0.0
    %552 = vmatmul.mubr.f32.gmra.mrb[0].mxu0 %v483
    %v553 = vpop.f32.mrb[0].mxu0
    %v554 = vadd.f32 0.0, %v553
    %v555 = vpop.f32.mrb[0].mxu0
    %556 = vdwg.mxu0
    %557 = vrot.lane.b32.xlu0 %v144, 120
    %v558 = vpop.permute.xlu0 %557
    %559 = vrot.lane.b32.xlu0 %v141, 72
    %v560 = vpop.permute.xlu0 %559
    %v561 = vsel %vm148, %v558, 0
    %v563 = vsel %vm148, %v560, 0
    %565 = vmatprep.subr.mxu0 0.0
    %566 = vmatpush1.xpose.msra.mxu0 %v563
    %567 = vmatprep.subr.mxu0 0.0
    %568 = vmatpush1.xpose.msra.mxu0 0.0
    %569 = vmatprep.subr.mxu0 0.0
    %570 = vmatpush1.xpose.msra.mxu0 0.0
    %571 = vmatprep.subr.mxu0 0.0
    %572 = vmatpush1.xpose.msra.mxu0 0.0
    %573 = vmatprep.subr.mxu0 0.0
    %574 = vmatpush1.xpose.msra.mxu0 0.0
    %575 = vmatprep.subr.mxu0 0.0
    %576 = vmatpush1.xpose.msra.mxu0 0.0
    %577 = vmatprep.subr.mxu0 0.0
    %578 = vmatpush1.xpose.msra.mxu0 0.0
    %579 = vmatprep.subr.mxu0 0.0
    %580 = vmatpush1.xpose.msra.mxu0 0.0
    %581 = vmatprep.subr.mxu0 0.0
    %582 = vmatpush1.xpose.msra.mxu0 0.0
    %583 = vmatprep.subr.mxu0 0.0
    %584 = vmatpush1.xpose.msra.mxu0 0.0
    %585 = vmatprep.subr.mxu0 0.0
    %586 = vmatpush1.xpose.msra.mxu0 0.0
    %587 = vmatprep.subr.mxu0 0.0
    %588 = vmatpush1.xpose.msra.mxu0 0.0
    %589 = vmatprep.subr.mxu0 0.0
    %590 = vmatpush1.xpose.msra.mxu0 0.0
    %591 = vmatprep.subr.mxu0 0.0
    %592 = vmatpush1.xpose.msra.mxu0 0.0
    %593 = vmatprep.subr.mxu0 0.0
    %594 = vmatpush1.xpose.msra.mxu0 0.0
    %595 = vmatprep.subr.mxu0 0.0
    %596 = vmatpush1.xpose.msra.mxu0 0.0
    %597 = vmatprep.subr.mxu0 0.0
    %598 = vmatpush1.xpose.msra.mxu0 0.0
    %599 = vmatprep.subr.mxu0 0.0
    %600 = vmatpush1.xpose.msra.mxu0 0.0
    %601 = vmatprep.subr.mxu0 0.0
    %602 = vmatpush1.xpose.msra.mxu0 0.0
    %603 = vmatprep.subr.mxu0 0.0
    %604 = vmatpush1.xpose.msra.mxu0 0.0
    %605 = vmatprep.subr.mxu0 0.0
    %606 = vmatpush1.xpose.msra.mxu0 0.0
    %607 = vmatprep.subr.mxu0 0.0
    %608 = vmatpush1.xpose.msra.mxu0 0.0
    %609 = vmatprep.subr.mxu0 0.0
    %610 = vmatpush1.xpose.msra.mxu0 0.0
    %611 = vmatprep.subr.mxu0 0.0
    %612 = vmatpush1.xpose.msra.mxu0 0.0
    %613 = vmatprep.subr.mxu0 0.0
    %614 = vmatpush1.xpose.msra.mxu0 0.0
    %615 = vmatprep.subr.mxu0 0.0
    %616 = vmatpush1.xpose.msra.mxu0 0.0
    %617 = vmatprep.subr.mxu0 0.0
    %618 = vmatpush1.xpose.msra.mxu0 0.0
    %619 = vmatprep.subr.mxu0 0.0
    %620 = vmatpush1.xpose.msra.mxu0 0.0
    %621 = vmatprep.subr.mxu0 0.0
    %622 = vmatpush1.xpose.msra.mxu0 0.0
    %623 = vmatprep.subr.mxu0 0.0
    %624 = vmatpush1.xpose.msra.mxu0 0.0
    %625 = vmatprep.subr.mxu0 0.0
    %626 = vmatpush1.xpose.msra.mxu0 0.0
    %627 = vmatprep.subr.mxu0 0.0
    %628 = vmatpush1.xpose.msra.mxu0 0.0
    %629 = vmatprep.mubr.f32.mxu0 0.0
    %630 = vmatmul.mubr.f32.gmra.mrb[0].mxu0 %v561
    %v631 = vpop.f32.mrb[0].mxu0
    %v632 = vadd.f32 0.0, %v631
    %v633 = vpop.f32.mrb[0].mxu0
    %634 = vdwg.mxu0
    %v635 = vsel %vm148, %v554, -inf
    %636 = vmax.xlane.f32.xlu0 %v635
    %v637 = vpop.xlane.xlu0 %636
    %v638 = vsel %vm148, %v632, -inf
    %639 = vmax.xlane.f32.xlu0 %v638
    %v640 = vpop.xlane.xlu0 %639
    %v641 = vsub.f32 %v554, %v637
    %v642 = vsub.f32 %v632, %v640
    %v643 = vmul.f32 %v641, 1.442695
    %v644 = vpow.pop %v643
    %v645 = vmul.f32 %v642, 1.442695
    %v646 = vpow.pop %v645
    %v647 = vsel %vm148, %v644, 0.0
    %648 = vadd.xlane.f32.xlu0 %v647
    %v649 = vpop.xlane.xlu0 %648
    %v650 = vsel %vm148, %v646, 0.0
    %651 = vadd.xlane.f32.xlu0 %v650
    %v652 = vpop.xlane.xlu0 %651
    %v653 = vrcp.pop %v649
    %v654 = vrcp.pop %v652
    %v655 = vmul.f32 %v644, %v653
    %v656 = vmul.f32 %v646, %v654
    %658 = vrot.lane.b32.xlu0 %v139, 8
    %v659 = vpop.permute.xlu0 %658
    %660 = vrot.lane.b32.xlu0 %v140, 8
    %v661 = vpop.permute.xlu0 %660
    %v662 = vsel %vm148, %v659, %v661
    %v665 = vsel %vm148, %v655, 0
    %667 = vmatprep.subr.mxu0 0.0
    %668 = vmatpush1.msra.mxu0 %v662
    %669 = vmatprep.subr.mxu0 0.0
    %670 = vmatpush1.msra.mxu0 0.0
    %671 = vmatprep.subr.mxu0 0.0
    %672 = vmatpush1.msra.mxu0 0.0
    %673 = vmatprep.subr.mxu0 0.0
    %674 = vmatpush1.msra.mxu0 0.0
    %675 = vmatprep.subr.mxu0 0.0
    %676 = vmatpush1.msra.mxu0 0.0
    %677 = vmatprep.subr.mxu0 0.0
    %678 = vmatpush1.msra.mxu0 0.0
    %679 = vmatprep.subr.mxu0 0.0
    %680 = vmatpush1.msra.mxu0 0.0
    %681 = vmatprep.subr.mxu0 0.0
    %682 = vmatpush1.msra.mxu0 0.0
    %683 = vmatprep.subr.mxu0 0.0
    %684 = vmatpush1.msra.mxu0 0.0
    %685 = vmatprep.subr.mxu0 0.0
    %686 = vmatpush1.msra.mxu0 0.0
    %687 = vmatprep.subr.mxu0 0.0
    %688 = vmatpush1.msra.mxu0 0.0
    %689 = vmatprep.subr.mxu0 0.0
    %690 = vmatpush1.msra.mxu0 0.0
    %691 = vmatprep.subr.mxu0 0.0
    %692 = vmatpush1.msra.mxu0 0.0
    %693 = vmatprep.subr.mxu0 0.0
    %694 = vmatpush1.msra.mxu0 0.0
    %695 = vmatprep.subr.mxu0 0.0
    %696 = vmatpush1.msra.mxu0 0.0
    %697 = vmatprep.subr.mxu0 0.0
    %698 = vmatpush1.msra.mxu0 0.0
    %699 = vmatprep.subr.mxu0 0.0
    %700 = vmatpush1.msra.mxu0 0.0
    %701 = vmatprep.subr.mxu0 0.0
    %702 = vmatpush1.msra.mxu0 0.0
    %703 = vmatprep.subr.mxu0 0.0
    %704 = vmatpush1.msra.mxu0 0.0
    %705 = vmatprep.subr.mxu0 0.0
    %706 = vmatpush1.msra.mxu0 0.0
    %707 = vmatprep.subr.mxu0 0.0
    %708 = vmatpush1.msra.mxu0 0.0
    %709 = vmatprep.subr.mxu0 0.0
    %710 = vmatpush1.msra.mxu0 0.0
    %711 = vmatprep.subr.mxu0 0.0
    %712 = vmatpush1.msra.mxu0 0.0
    %713 = vmatprep.subr.mxu0 0.0
    %714 = vmatpush1.msra.mxu0 0.0
    %715 = vmatprep.subr.mxu0 0.0
    %716 = vmatpush1.msra.mxu0 0.0
    %717 = vmatprep.subr.mxu0 0.0
    %718 = vmatpush1.msra.mxu0 0.0
    %719 = vmatprep.subr.mxu0 0.0
    %720 = vmatpush1.msra.mxu0 0.0
    %721 = vmatprep.subr.mxu0 0.0
    %722 = vmatpush1.msra.mxu0 0.0
    %723 = vmatprep.subr.mxu0 0.0
    %724 = vmatpush1.msra.mxu0 0.0
    %725 = vmatprep.subr.mxu0 0.0
    %726 = vmatpush1.msra.mxu0 0.0
    %727 = vmatprep.subr.mxu0 0.0
    %728 = vmatpush1.msra.mxu0 0.0
    %729 = vmatprep.subr.mxu0 0.0
    %730 = vmatpush1.msra.mxu0 0.0
    %731 = vmatprep.mubr.f32.mxu0 0.0
    %732 = vmatmul.mubr.f32.gmra.mrb[0].mxu0 %v665
    %v733 = vpop.f32.mrb[0].mxu0
    %v734 = vadd.f32 0.0, %v733
    %v735 = vpop.f32.mrb[0].mxu0
    %736 = vdwg.mxu0
    %738 = vrot.lane.b32.xlu0 %v141, 8
    %v739 = vpop.permute.xlu0 %738
    %740 = vrot.lane.b32.xlu0 %v142, 8
    %v741 = vpop.permute.xlu0 %740
    %v742 = vsel %vm148, %v739, %v741
    %v745 = vsel %vm148, %v656, 0
    %747 = vmatprep.subr.mxu0 0.0
    %748 = vmatpush1.msra.mxu0 %v742
    %749 = vmatprep.subr.mxu0 0.0
    %750 = vmatpush1.msra.mxu0 0.0
    %751 = vmatprep.subr.mxu0 0.0
    %752 = vmatpush1.msra.mxu0 0.0
    %753 = vmatprep.subr.mxu0 0.0
    %754 = vmatpush1.msra.mxu0 0.0
    %755 = vmatprep.subr.mxu0 0.0
    %756 = vmatpush1.msra.mxu0 0.0
    %757 = vmatprep.subr.mxu0 0.0
    %758 = vmatpush1.msra.mxu0 0.0
    %759 = vmatprep.subr.mxu0 0.0
    %760 = vmatpush1.msra.mxu0 0.0
    %761 = vmatprep.subr.mxu0 0.0
    %762 = vmatpush1.msra.mxu0 0.0
    %763 = vmatprep.subr.mxu0 0.0
    %764 = vmatpush1.msra.mxu0 0.0
    %765 = vmatprep.subr.mxu0 0.0
    %766 = vmatpush1.msra.mxu0 0.0
    %767 = vmatprep.subr.mxu0 0.0
    %768 = vmatpush1.msra.mxu0 0.0
    %769 = vmatprep.subr.mxu0 0.0
    %770 = vmatpush1.msra.mxu0 0.0
    %771 = vmatprep.subr.mxu0 0.0
    %772 = vmatpush1.msra.mxu0 0.0
    %773 = vmatprep.subr.mxu0 0.0
    %774 = vmatpush1.msra.mxu0 0.0
    %775 = vmatprep.subr.mxu0 0.0
    %776 = vmatpush1.msra.mxu0 0.0
    %777 = vmatprep.subr.mxu0 0.0
    %778 = vmatpush1.msra.mxu0 0.0
    %779 = vmatprep.subr.mxu0 0.0
    %780 = vmatpush1.msra.mxu0 0.0
    %781 = vmatprep.subr.mxu0 0.0
    %782 = vmatpush1.msra.mxu0 0.0
    %783 = vmatprep.subr.mxu0 0.0
    %784 = vmatpush1.msra.mxu0 0.0
    %785 = vmatprep.subr.mxu0 0.0
    %786 = vmatpush1.msra.mxu0 0.0
    %787 = vmatprep.subr.mxu0 0.0
    %788 = vmatpush1.msra.mxu0 0.0
    %789 = vmatprep.subr.mxu0 0.0
    %790 = vmatpush1.msra.mxu0 0.0
    %791 = vmatprep.subr.mxu0 0.0
    %792 = vmatpush1.msra.mxu0 0.0
    %793 = vmatprep.subr.mxu0 0.0
    %794 = vmatpush1.msra.mxu0 0.0
    %795 = vmatprep.subr.mxu0 0.0
    %796 = vmatpush1.msra.mxu0 0.0
    %797 = vmatprep.subr.mxu0 0.0
    %798 = vmatpush1.msra.mxu0 0.0
    %799 = vmatprep.subr.mxu0 0.0
    %800 = vmatpush1.msra.mxu0 0.0
    %801 = vmatprep.subr.mxu0 0.0
    %802 = vmatpush1.msra.mxu0 0.0
    %803 = vmatprep.subr.mxu0 0.0
    %804 = vmatpush1.msra.mxu0 0.0
    %805 = vmatprep.subr.mxu0 0.0
    %806 = vmatpush1.msra.mxu0 0.0
    %807 = vmatprep.subr.mxu0 0.0
    %808 = vmatpush1.msra.mxu0 0.0
    %809 = vmatprep.subr.mxu0 0.0
    %810 = vmatpush1.msra.mxu0 0.0
    %811 = vmatprep.mubr.f32.mxu0 0.0
    %812 = vmatmul.mubr.f32.gmra.mrb[0].mxu0 %v745
    %v813 = vpop.f32.mrb[0].mxu0
    %v814 = vadd.f32 0.0, %v813
    %v815 = vpop.f32.mrb[0].mxu0
    %816 = vdwg.mxu0
    %v817 = vld [vmem:[%s3 + $0x18] sm:$0xff]
    %v818 = vld [vmem:[%s3 + $0x20] sm:$0xff]
    %v819 = vld [vmem:[%s3 + $0x28] sm:$0xff]
    %vm820 = vcmask 195584
    %v822 = vsel %vm820, %v734, 0
    %v825 = vsel %vm820, %v814, 0
    %827 = vmatprep.subr.mxu0 0.0
    %828 = vmatpush1.msra.mxu0 %v817
    %829 = vmatprep.subr.mxu0 0.0
    %830 = vmatpush1.msra.mxu0 %v818
    %831 = vmatprep.subr.mxu0 0.0
    %832 = vmatpush1.msra.mxu0 %v819
    %833 = vmatprep.subr.mxu0 0.0
    %834 = vmatpush1.msra.mxu0 0.0
    %835 = vmatprep.subr.mxu0 0.0
    %836 = vmatpush1.msra.mxu0 0.0
    %837 = vmatprep.subr.mxu0 0.0
    %838 = vmatpush1.msra.mxu0 0.0
    %839 = vmatprep.subr.mxu0 0.0
    %840 = vmatpush1.msra.mxu0 0.0
    %841 = vmatprep.subr.mxu0 0.0
    %842 = vmatpush1.msra.mxu0 0.0
    %843 = vmatprep.subr.mxu0 0.0
    %844 = vmatpush1.msra.mxu0 0.0
    %845 = vmatprep.subr.mxu0 0.0
    %846 = vmatpush1.msra.mxu0 0.0
    %847 = vmatprep.subr.mxu0 0.0
    %848 = vmatpush1.msra.mxu0 0.0
    %849 = vmatprep.subr.mxu0 0.0
    %850 = vmatpush1.msra.mxu0 0.0
    %851 = vmatprep.subr.mxu0 0.0
    %852 = vmatpush1.msra.mxu0 0.0
    %853 = vmatprep.subr.mxu0 0.0
    %854 = vmatpush1.msra.mxu0 0.0
    %855 = vmatprep.subr.mxu0 0.0
    %856 = vmatpush1.msra.mxu0 0.0
    %857 = vmatprep.subr.mxu0 0.0
    %858 = vmatpush1.msra.mxu0 0.0
    %859 = vmatprep.subr.mxu0 0.0
    %860 = vmatpush1.msra.mxu0 0.0
    %861 = vmatprep.subr.mxu0 0.0
    %862 = vmatpush1.msra.mxu0 0.0
    %863 = vmatprep.subr.mxu0 0.0
    %864 = vmatpush1.msra.mxu0 0.0
    %865 = vmatprep.subr.mxu0 0.0
    %866 = vmatpush1.msra.mxu0 0.0
    %867 = vmatprep.subr.mxu0 0.0
    %868 = vmatpush1.msra.mxu0 0.0
    %869 = vmatprep.subr.mxu0 0.0
    %870 = vmatpush1.msra.mxu0 0.0
    %871 = vmatprep.subr.mxu0 0.0
    %872 = vmatpush1.msra.mxu0 0.0
    %873 = vmatprep.subr.mxu0 0.0
    %874 = vmatpush1.msra.mxu0 0.0
    %875 = vmatprep.subr.mxu0 0.0
    %876 = vmatpush1.msra.mxu0 0.0
    %877 = vmatprep.subr.mxu0 0.0
    %878 = vmatpush1.msra.mxu0 0.0
    %879 = vmatprep.subr.mxu0 0.0
    %880 = vmatpush1.msra.mxu0 0.0
    %881 = vmatprep.subr.mxu0 0.0
    %882 = vmatpush1.msra.mxu0 0.0
    %883 = vmatprep.subr.mxu0 0.0
    %884 = vmatpush1.msra.mxu0 0.0
    %885 = vmatprep.subr.mxu0 0.0
    %886 = vmatpush1.msra.mxu0 0.0
    %887 = vmatprep.subr.mxu0 0.0
    %888 = vmatpush1.msra.mxu0 0.0
    %889 = vmatprep.subr.mxu0 0.0
    %890 = vmatpush1.msra.mxu0 0.0
    %891 = vmatprep.mubr.f32.mxu0 0.0
    %892 = vmatmul.mubr.f32.gmra.mrb[0].mxu0 %v822
    %v893 = vpop.f32.mrb[0].mxu0
    %v894 = vadd.f32 0.0, %v893
    %v895 = vpop.f32.mrb[0].mxu0
    %896 = vmatprep.mubr.f32.mxu0 0.0
    %897 = vmatmul.mubr.f32.gmra.mrb[0].mxu0 %v825
    %v898 = vpop.f32.mrb[0].mxu0
    %v899 = vadd.f32 0.0, %v898
    %v900 = vpop.f32.mrb[0].mxu0
    %901 = vdwg.mxu0
    %v903 = vsel %vm820, %v397, 0
    %v906 = vsel %vm820, %v473, 0
    %908 = vmatprep.subr.mxu0 0.0
    %909 = vmatpush1.msra.mxu0 %v476
    %910 = vmatprep.subr.mxu0 0.0
    %911 = vmatpush1.msra.mxu0 %v477
    %912 = vmatprep.subr.mxu0 0.0
    %913 = vmatpush1.msra.mxu0 %v478
    %914 = vmatprep.subr.mxu0 0.0
    %915 = vmatpush1.msra.mxu0 0.0
    %916 = vmatprep.subr.mxu0 0.0
    %917 = vmatpush1.msra.mxu0 0.0
    %918 = vmatprep.subr.mxu0 0.0
    %919 = vmatpush1.msra.mxu0 0.0
    %920 = vmatprep.subr.mxu0 0.0
    %921 = vmatpush1.msra.mxu0 0.0
    %922 = vmatprep.subr.mxu0 0.0
    %923 = vmatpush1.msra.mxu0 0.0
    %924 = vmatprep.subr.mxu0 0.0
    %925 = vmatpush1.msra.mxu0 0.0
    %926 = vmatprep.subr.mxu0 0.0
    %927 = vmatpush1.msra.mxu0 0.0
    %928 = vmatprep.subr.mxu0 0.0
    %929 = vmatpush1.msra.mxu0 0.0
    %930 = vmatprep.subr.mxu0 0.0
    %931 = vmatpush1.msra.mxu0 0.0
    %932 = vmatprep.subr.mxu0 0.0
    %933 = vmatpush1.msra.mxu0 0.0
    %934 = vmatprep.subr.mxu0 0.0
    %935 = vmatpush1.msra.mxu0 0.0
    %936 = vmatprep.subr.mxu0 0.0
    %937 = vmatpush1.msra.mxu0 0.0
    %938 = vmatprep.subr.mxu0 0.0
    %939 = vmatpush1.msra.mxu0 0.0
    %940 = vmatprep.subr.mxu0 0.0
    %941 = vmatpush1.msra.mxu0 0.0
    %942 = vmatprep.subr.mxu0 0.0
    %943 = vmatpush1.msra.mxu0 0.0
    %944 = vmatprep.subr.mxu0 0.0
    %945 = vmatpush1.msra.mxu0 0.0
    %946 = vmatprep.subr.mxu0 0.0
    %947 = vmatpush1.msra.mxu0 0.0
    %948 = vmatprep.subr.mxu0 0.0
    %949 = vmatpush1.msra.mxu0 0.0
    %950 = vmatprep.subr.mxu0 0.0
    %951 = vmatpush1.msra.mxu0 0.0
    %952 = vmatprep.subr.mxu0 0.0
    %953 = vmatpush1.msra.mxu0 0.0
    %954 = vmatprep.subr.mxu0 0.0
    %955 = vmatpush1.msra.mxu0 0.0
    %956 = vmatprep.subr.mxu0 0.0
    %957 = vmatpush1.msra.mxu0 0.0
    %958 = vmatprep.subr.mxu0 0.0
    %959 = vmatpush1.msra.mxu0 0.0
    %960 = vmatprep.subr.mxu0 0.0
    %961 = vmatpush1.msra.mxu0 0.0
    %962 = vmatprep.subr.mxu0 0.0
    %963 = vmatpush1.msra.mxu0 0.0
    %964 = vmatprep.subr.mxu0 0.0
    %965 = vmatpush1.msra.mxu0 0.0
    %966 = vmatprep.subr.mxu0 0.0
    %967 = vmatpush1.msra.mxu0 0.0
    %968 = vmatprep.subr.mxu0 0.0
    %969 = vmatpush1.msra.mxu0 0.0
    %970 = vmatprep.subr.mxu0 0.0
    %971 = vmatpush1.msra.mxu0 0.0
    %972 = vmatprep.mubr.f32.mxu0 0.0
    %973 = vmatmul.mubr.f32.gmra.mrb[0].mxu0 %v903
    %v974 = vpop.f32.mrb[0].mxu0
    %v975 = vadd.f32 %v894, %v974
    %v976 = vpop.f32.mrb[0].mxu0
    %977 = vmatprep.mubr.f32.mxu0 0.0
    %978 = vmatmul.mubr.f32.gmra.mrb[0].mxu0 %v906
    %v979 = vpop.f32.mrb[0].mxu0
    %v980 = vadd.f32 %v899, %v979
    %v981 = vpop.f32.mrb[0].mxu0
    %982 = vdwg.mxu0
    %983 = vrot.lane.b32.xlu0 %v143, 112
    %v984 = vpop.permute.xlu0 %983
    %985 = vrot.lane.b32.xlu0 %v139, 64
    %v986 = vpop.permute.xlu0 %985
    %v987 = vsel %vm148, %v984, 0
    %v989 = vsel %vm148, %v986, 0
    %991 = vmatprep.subr.mxu0 0.0
    %992 = vmatpush1.xpose.msra.mxu0 %v989
    %993 = vmatprep.subr.mxu0 0.0
    %994 = vmatpush1.xpose.msra.mxu0 0.0
    %995 = vmatprep.subr.mxu0 0.0
    %996 = vmatpush1.xpose.msra.mxu0 0.0
    %997 = vmatprep.subr.mxu0 0.0
    %998 = vmatpush1.xpose.msra.mxu0 0.0
    %999 = vmatprep.subr.mxu0 0.0
    %1000 = vmatpush1.xpose.msra.mxu0 0.0
    %1001 = vmatprep.subr.mxu0 0.0
    %1002 = vmatpush1.xpose.msra.mxu0 0.0
    %1003 = vmatprep.subr.mxu0 0.0
    %1004 = vmatpush1.xpose.msra.mxu0 0.0
    %1005 = vmatprep.subr.mxu0 0.0
    %1006 = vmatpush1.xpose.msra.mxu0 0.0
    %1007 = vmatprep.subr.mxu0 0.0
    %1008 = vmatpush1.xpose.msra.mxu0 0.0
    %1009 = vmatprep.subr.mxu0 0.0
    %1010 = vmatpush1.xpose.msra.mxu0 0.0
    %1011 = vmatprep.subr.mxu0 0.0
    %1012 = vmatpush1.xpose.msra.mxu0 0.0
    %1013 = vmatprep.subr.mxu0 0.0
    %1014 = vmatpush1.xpose.msra.mxu0 0.0
    %1015 = vmatprep.subr.mxu0 0.0
    %1016 = vmatpush1.xpose.msra.mxu0 0.0
    %1017 = vmatprep.subr.mxu0 0.0
    %1018 = vmatpush1.xpose.msra.mxu0 0.0
    %1019 = vmatprep.subr.mxu0 0.0
    %1020 = vmatpush1.xpose.msra.mxu0 0.0
    %1021 = vmatprep.subr.mxu0 0.0
    %1022 = vmatpush1.xpose.msra.mxu0 0.0
    %1023 = vmatprep.subr.mxu0 0.0
    %1024 = vmatpush1.xpose.msra.mxu0 0.0
    %1025 = vmatprep.subr.mxu0 0.0
    %1026 = vmatpush1.xpose.msra.mxu0 0.0
    %1027 = vmatprep.subr.mxu0 0.0
    %1028 = vmatpush1.xpose.msra.mxu0 0.0
    %1029 = vmatprep.subr.mxu0 0.0
    %1030 = vmatpush1.xpose.msra.mxu0 0.0
    %1031 = vmatprep.subr.mxu0 0.0
    %1032 = vmatpush1.xpose.msra.mxu0 0.0
    %1033 = vmatprep.subr.mxu0 0.0
    %1034 = vmatpush1.xpose.msra.mxu0 0.0
    %1035 = vmatprep.subr.mxu0 0.0
    %1036 = vmatpush1.xpose.msra.mxu0 0.0
    %1037 = vmatprep.subr.mxu0 0.0
    %1038 = vmatpush1.xpose.msra.mxu0 0.0
    %1039 = vmatprep.subr.mxu0 0.0
    %1040 = vmatpush1.xpose.msra.mxu0 0.0
    %1041 = vmatprep.subr.mxu0 0.0
    %1042 = vmatpush1.xpose.msra.mxu0 0.0
    %1043 = vmatprep.subr.mxu0 0.0
    %1044 = vmatpush1.xpose.msra.mxu0 0.0
    %1045 = vmatprep.subr.mxu0 0.0
    %1046 = vmatpush1.xpose.msra.mxu0 0.0
    %1047 = vmatprep.subr.mxu0 0.0
    %1048 = vmatpush1.xpose.msra.mxu0 0.0
    %1049 = vmatprep.subr.mxu0 0.0
    %1050 = vmatpush1.xpose.msra.mxu0 0.0
    %1051 = vmatprep.subr.mxu0 0.0
    %1052 = vmatpush1.xpose.msra.mxu0 0.0
    %1053 = vmatprep.subr.mxu0 0.0
    %1054 = vmatpush1.xpose.msra.mxu0 0.0
    %1055 = vmatprep.mubr.f32.mxu0 0.0
    %1056 = vmatmul.mubr.f32.gmra.mrb[0].mxu0 %v987
    %v1057 = vpop.f32.mrb[0].mxu0
    %v1058 = vadd.f32 0.0, %v1057
    %v1059 = vpop.f32.mrb[0].mxu0
    %1060 = vdwg.mxu0
    %1061 = vrot.lane.b32.xlu0 %v144, 112
    %v1062 = vpop.permute.xlu0 %1061
    %1063 = vrot.lane.b32.xlu0 %v141, 64
    %v1064 = vpop.permute.xlu0 %1063
    %v1065 = vsel %vm148, %v1062, 0
    %v1067 = vsel %vm148, %v1064, 0
    %1069 = vmatprep.subr.mxu0 0.0
    %1070 = vmatpush1.xpose.msra.mxu0 %v1067
    %1071 = vmatprep.subr.mxu0 0.0
    %1072 = vmatpush1.xpose.msra.mxu0 0.0
    %1073 = vmatprep.subr.mxu0 0.0
    %1074 = vmatpush1.xpose.msra.mxu0 0.0
    %1075 = vmatprep.subr.mxu0 0.0
    %1076 = vmatpush1.xpose.msra.mxu0 0.0
    %1077 = vmatprep.subr.mxu0 0.0
    %1078 = vmatpush1.xpose.msra.mxu0 0.0
    %1079 = vmatprep.subr.mxu0 0.0
    %1080 = vmatpush1.xpose.msra.mxu0 0.0
    %1081 = vmatprep.subr.mxu0 0.0
    %1082 = vmatpush1.xpose.msra.mxu0 0.0
    %1083 = vmatprep.subr.mxu0 0.0
    %1084 = vmatpush1.xpose.msra.mxu0 0.0
    %1085 = vmatprep.subr.mxu0 0.0
    %1086 = vmatpush1.xpose.msra.mxu0 0.0
    %1087 = vmatprep.subr.mxu0 0.0
    %1088 = vmatpush1.xpose.msra.mxu0 0.0
    %1089 = vmatprep.subr.mxu0 0.0
    %1090 = vmatpush1.xpose.msra.mxu0 0.0
    %1091 = vmatprep.subr.mxu0 0.0
    %1092 = vmatpush1.xpose.msra.mxu0 0.0
    %1093 = vmatprep.subr.mxu0 0.0
    %1094 = vmatpush1.xpose.msra.mxu0 0.0
    %1095 = vmatprep.subr.mxu0 0.0
    %1096 = vmatpush1.xpose.msra.mxu0 0.0
    %1097 = vmatprep.subr.mxu0 0.0
    %1098 = vmatpush1.xpose.msra.mxu0 0.0
    %1099 = vmatprep.subr.mxu0 0.0
    %1100 = vmatpush1.xpose.msra.mxu0 0.0
    %1101 = vmatprep.subr.mxu0 0.0
    %1102 = vmatpush1.xpose.msra.mxu0 0.0
    %1103 = vmatprep.subr.mxu0 0.0
    %1104 = vmatpush1.xpose.msra.mxu0 0.0
    %1105 = vmatprep.subr.mxu0 0.0
    %1106 = vmatpush1.xpose.msra.mxu0 0.0
    %1107 = vmatprep.subr.mxu0 0.0
    %1108 = vmatpush1.xpose.msra.mxu0 0.0
    %1109 = vmatprep.subr.mxu0 0.0
    %1110 = vmatpush1.xpose.msra.mxu0 0.0
    %1111 = vmatprep.subr.mxu0 0.0
    %1112 = vmatpush1.xpose.msra.mxu0 0.0
    %1113 = vmatprep.subr.mxu0 0.0
    %1114 = vmatpush1.xpose.msra.mxu0 0.0
    %1115 = vmatprep.subr.mxu0 0.0
    %1116 = vmatpush1.xpose.msra.mxu0 0.0
    %1117 = vmatprep.subr.mxu0 0.0
    %1118 = vmatpush1.xpose.msra.mxu0 0.0
    %1119 = vmatprep.subr.mxu0 0.0
    %1120 = vmatpush1.xpose.msra.mxu0 0.0
    %1121 = vmatprep.subr.mxu0 0.0
    %1122 = vmatpush1.xpose.msra.mxu0 0.0
    %1123 = vmatprep.subr.mxu0 0.0
    %1124 = vmatpush1.xpose.msra.mxu0 0.0
    %1125 = vmatprep.subr.mxu0 0.0
    %1126 = vmatpush1.xpose.msra.mxu0 0.0
    %1127 = vmatprep.subr.mxu0 0.0
    %1128 = vmatpush1.xpose.msra.mxu0 0.0
    %1129 = vmatprep.subr.mxu0 0.0
    %1130 = vmatpush1.xpose.msra.mxu0 0.0
    %1131 = vmatprep.subr.mxu0 0.0
    %1132 = vmatpush1.xpose.msra.mxu0 0.0
    %1133 = vmatprep.mubr.f32.mxu0 0.0
    %1134 = vmatmul.mubr.f32.gmra.mrb[0].mxu0 %v1065
    %v1135 = vpop.f32.mrb[0].mxu0
    %v1136 = vadd.f32 0.0, %v1135
    %v1137 = vpop.f32.mrb[0].mxu0
    %1138 = vdwg.mxu0
    %v1139 = vsel %vm148, %v1058, -inf
    %1140 = vmax.xlane.f32.xlu0 %v1139
    %v1141 = vpop.xlane.xlu0 %1140
    %v1142 = vsel %vm148, %v1136, -inf
    %1143 = vmax.xlane.f32.xlu0 %v1142
    %v1144 = vpop.xlane.xlu0 %1143
    %v1145 = vsub.f32 %v1058, %v1141
    %v1146 = vsub.f32 %v1136, %v1144
    %v1147 = vmul.f32 %v1145, 1.442695
    %v1148 = vpow.pop %v1147
    %v1149 = vmul.f32 %v1146, 1.442695
    %v1150 = vpow.pop %v1149
    %v1151 = vsel %vm148, %v1148, 0.0
    %1152 = vadd.xlane.f32.xlu0 %v1151
    %v1153 = vpop.xlane.xlu0 %1152
    %v1154 = vsel %vm148, %v1150, 0.0
    %1155 = vadd.xlane.f32.xlu0 %v1154
    %v1156 = vpop.xlane.xlu0 %1155
    %v1157 = vrcp.pop %v1153
    %v1158 = vrcp.pop %v1156
    %v1159 = vmul.f32 %v1148, %v1157
    %v1160 = vmul.f32 %v1150, %v1158
    %1161 = vrot.lane.b32.xlu0 %v140, 112
    %v1162 = vpop.permute.xlu0 %1161
    %v1165 = vsel %vm148, %v1159, 0
    %1167 = vmatprep.subr.mxu0 0.0
    %1168 = vmatpush1.msra.mxu0 %v1162
    %1169 = vmatprep.subr.mxu0 0.0
    %1170 = vmatpush1.msra.mxu0 0.0
    %1171 = vmatprep.subr.mxu0 0.0
    %1172 = vmatpush1.msra.mxu0 0.0
    %1173 = vmatprep.subr.mxu0 0.0
    %1174 = vmatpush1.msra.mxu0 0.0
    %1175 = vmatprep.subr.mxu0 0.0
    %1176 = vmatpush1.msra.mxu0 0.0
    %1177 = vmatprep.subr.mxu0 0.0
    %1178 = vmatpush1.msra.mxu0 0.0
    %1179 = vmatprep.subr.mxu0 0.0
    %1180 = vmatpush1.msra.mxu0 0.0
    %1181 = vmatprep.subr.mxu0 0.0
    %1182 = vmatpush1.msra.mxu0 0.0
    %1183 = vmatprep.subr.mxu0 0.0
    %1184 = vmatpush1.msra.mxu0 0.0
    %1185 = vmatprep.subr.mxu0 0.0
    %1186 = vmatpush1.msra.mxu0 0.0
    %1187 = vmatprep.subr.mxu0 0.0
    %1188 = vmatpush1.msra.mxu0 0.0
    %1189 = vmatprep.subr.mxu0 0.0
    %1190 = vmatpush1.msra.mxu0 0.0
    %1191 = vmatprep.subr.mxu0 0.0
    %1192 = vmatpush1.msra.mxu0 0.0
    %1193 = vmatprep.subr.mxu0 0.0
    %1194 = vmatpush1.msra.mxu0 0.0
    %1195 = vmatprep.subr.mxu0 0.0
    %1196 = vmatpush1.msra.mxu0 0.0
    %1197 = vmatprep.subr.mxu0 0.0
    %1198 = vmatpush1.msra.mxu0 0.0
    %1199 = vmatprep.subr.mxu0 0.0
    %1200 = vmatpush1.msra.mxu0 0.0
    %1201 = vmatprep.subr.mxu0 0.0
    %1202 = vmatpush1.msra.mxu0 0.0
    %1203 = vmatprep.subr.mxu0 0.0
    %1204 = vmatpush1.msra.mxu0 0.0
    %1205 = vmatprep.subr.mxu0 0.0
    %1206 = vmatpush1.msra.mxu0 0.0
    %1207 = vmatprep.subr.mxu0 0.0
    %1208 = vmatpush1.msra.mxu0 0.0
    %1209 = vmatprep.subr.mxu0 0.0
    %1210 = vmatpush1.msra.mxu0 0.0
    %1211 = vmatprep.subr.mxu0 0.0
    %1212 = vmatpush1.msra.mxu0 0.0
    %1213 = vmatprep.subr.mxu0 0.0
    %1214 = vmatpush1.msra.mxu0 0.0
    %1215 = vmatprep.subr.mxu0 0.0
    %1216 = vmatpush1.msra.mxu0 0.0
    %1217 = vmatprep.subr.mxu0 0.0
    %1218 = vmatpush1.msra.mxu0 0.0
    %1219 = vmatprep.subr.mxu0 0.0
    %1220 = vmatpush1.msra.mxu0 0.0
    %1221 = vmatprep.subr.mxu0 0.0
    %1222 = vmatpush1.msra.mxu0 0.0
    %1223 = vmatprep.subr.mxu0 0.0
    %1224 = vmatpush1.msra.mxu0 0.0
    %1225 = vmatprep.subr.mxu0 0.0
    %1226 = vmatpush1.msra.mxu0 0.0
    %1227 = vmatprep.subr.mxu0 0.0
    %1228 = vmatpush1.msra.mxu0 0.0
    %1229 = vmatprep.subr.mxu0 0.0
    %1230 = vmatpush1.msra.mxu0 0.0
    %1231 = vmatprep.mubr.f32.mxu0 0.0
    %1232 = vmatmul.mubr.f32.gmra.mrb[0].mxu0 %v1165
    %v1233 = vpop.f32.mrb[0].mxu0
    %v1234 = vadd.f32 0.0, %v1233
    %v1235 = vpop.f32.mrb[0].mxu0
    %1236 = vdwg.mxu0
    %1237 = vrot.lane.b32.xlu0 %v142, 112
    %v1238 = vpop.permute.xlu0 %1237
    %v1241 = vsel %vm148, %v1160, 0
    %1243 = vmatprep.subr.mxu0 0.0
    %1244 = vmatpush1.msra.mxu0 %v1238
    %1245 = vmatprep.subr.mxu0 0.0
    %1246 = vmatpush1.msra.mxu0 0.0
    %1247 = vmatprep.subr.mxu0 0.0
    %1248 = vmatpush1.msra.mxu0 0.0
    %1249 = vmatprep.subr.mxu0 0.0
    %1250 = vmatpush1.msra.mxu0 0.0
    %1251 = vmatprep.subr.mxu0 0.0
    %1252 = vmatpush1.msra.mxu0 0.0
    %1253 = vmatprep.subr.mxu0 0.0
    %1254 = vmatpush1.msra.mxu0 0.0
    %1255 = vmatprep.subr.mxu0 0.0
    %1256 = vmatpush1.msra.mxu0 0.0
    %1257 = vmatprep.subr.mxu0 0.0
    %1258 = vmatpush1.msra.mxu0 0.0
    %1259 = vmatprep.subr.mxu0 0.0
    %1260 = vmatpush1.msra.mxu0 0.0
    %1261 = vmatprep.subr.mxu0 0.0
    %1262 = vmatpush1.msra.mxu0 0.0
    %1263 = vmatprep.subr.mxu0 0.0
    %1264 = vmatpush1.msra.mxu0 0.0
    %1265 = vmatprep.subr.mxu0 0.0
    %1266 = vmatpush1.msra.mxu0 0.0
    %1267 = vmatprep.subr.mxu0 0.0
    %1268 = vmatpush1.msra.mxu0 0.0
    %1269 = vmatprep.subr.mxu0 0.0
    %1270 = vmatpush1.msra.mxu0 0.0
    %1271 = vmatprep.subr.mxu0 0.0
    %1272 = vmatpush1.msra.mxu0 0.0
    %1273 = vmatprep.subr.mxu0 0.0
    %1274 = vmatpush1.msra.mxu0 0.0
    %1275 = vmatprep.subr.mxu0 0.0
    %1276 = vmatpush1.msra.mxu0 0.0
    %1277 = vmatprep.subr.mxu0 0.0
    %1278 = vmatpush1.msra.mxu0 0.0
    %1279 = vmatprep.subr.mxu0 0.0
    %1280 = vmatpush1.msra.mxu0 0.0
    %1281 = vmatprep.subr.mxu0 0.0
    %1282 = vmatpush1.msra.mxu0 0.0
    %1283 = vmatprep.subr.mxu0 0.0
    %1284 = vmatpush1.msra.mxu0 0.0
    %1285 = vmatprep.subr.mxu0 0.0
    %1286 = vmatpush1.msra.mxu0 0.0
    %1287 = vmatprep.subr.mxu0 0.0
    %1288 = vmatpush1.msra.mxu0 0.0
    %1289 = vmatprep.subr.mxu0 0.0
    %1290 = vmatpush1.msra.mxu0 0.0
    %1291 = vmatprep.subr.mxu0 0.0
    %1292 = vmatpush1.msra.mxu0 0.0
    %1293 = vmatprep.subr.mxu0 0.0
    %1294 = vmatpush1.msra.mxu0 0.0
    %1295 = vmatprep.subr.mxu0 0.0
    %1296 = vmatpush1.msra.mxu0 0.0
    %1297 = vmatprep.subr.mxu0 0.0
    %1298 = vmatpush1.msra.mxu0 0.0
    %1299 = vmatprep.subr.mxu0 0.0
    %1300 = vmatpush1.msra.mxu0 0.0
    %1301 = vmatprep.subr.mxu0 0.0
    %1302 = vmatpush1.msra.mxu0 0.0
    %1303 = vmatprep.subr.mxu0 0.0
    %1304 = vmatpush1.msra.mxu0 0.0
    %1305 = vmatprep.subr.mxu0 0.0
    %1306 = vmatpush1.msra.mxu0 0.0
    %1307 = vmatprep.mubr.f32.mxu0 0.0
    %1308 = vmatmul.mubr.f32.gmra.mrb[0].mxu0 %v1241
    %v1309 = vpop.f32.mrb[0].mxu0
    %v1310 = vadd.f32 0.0, %v1309
    %v1311 = vpop.f32.mrb[0].mxu0
    %1312 = vdwg.mxu0
    %v1313 = vld [vmem:[%s3 + $0x30] sm:$0xff]
    %v1314 = vld [vmem:[%s3 + $0x38] sm:$0xff]
    %v1315 = vld [vmem:[%s3 + $0x40] sm:$0xff]
    %v1317 = vsel %vm820, %v1234, 0
    %v1320 = vsel %vm820, %v1310, 0
    %1322 = vmatprep.subr.mxu0 0.0
    %1323 = vmatpush1.msra.mxu0 %v1313
    %1324 = vmatprep.subr.mxu0 0.0
    %1325 = vmatpush1.msra.mxu0 %v1314
    %1326 = vmatprep.subr.mxu0 0.0
    %1327 = vmatpush1.msra.mxu0 %v1315
    %1328 = vmatprep.subr.mxu0 0.0
    %1329 = vmatpush1.msra.mxu0 0.0
    %1330 = vmatprep.subr.mxu0 0.0
    %1331 = vmatpush1.msra.mxu0 0.0
    %1332 = vmatprep.subr.mxu0 0.0
    %1333 = vmatpush1.msra.mxu0 0.0
    %1334 = vmatprep.subr.mxu0 0.0
    %1335 = vmatpush1.msra.mxu0 0.0
    %1336 = vmatprep.subr.mxu0 0.0
    %1337 = vmatpush1.msra.mxu0 0.0
    %1338 = vmatprep.subr.mxu0 0.0
    %1339 = vmatpush1.msra.mxu0 0.0
    %1340 = vmatprep.subr.mxu0 0.0
    %1341 = vmatpush1.msra.mxu0 0.0
    %1342 = vmatprep.subr.mxu0 0.0
    %1343 = vmatpush1.msra.mxu0 0.0
    %1344 = vmatprep.subr.mxu0 0.0
    %1345 = vmatpush1.msra.mxu0 0.0
    %1346 = vmatprep.subr.mxu0 0.0
    %1347 = vmatpush1.msra.mxu0 0.0
    %1348 = vmatprep.subr.mxu0 0.0
    %1349 = vmatpush1.msra.mxu0 0.0
    %1350 = vmatprep.subr.mxu0 0.0
    %1351 = vmatpush1.msra.mxu0 0.0
    %1352 = vmatprep.subr.mxu0 0.0
    %1353 = vmatpush1.msra.mxu0 0.0
    %1354 = vmatprep.subr.mxu0 0.0
    %1355 = vmatpush1.msra.mxu0 0.0
    %1356 = vmatprep.subr.mxu0 0.0
    %1357 = vmatpush1.msra.mxu0 0.0
    %1358 = vmatprep.subr.mxu0 0.0
    %1359 = vmatpush1.msra.mxu0 0.0
    %1360 = vmatprep.subr.mxu0 0.0
    %1361 = vmatpush1.msra.mxu0 0.0
    %1362 = vmatprep.subr.mxu0 0.0
    %1363 = vmatpush1.msra.mxu0 0.0
    %1364 = vmatprep.subr.mxu0 0.0
    %1365 = vmatpush1.msra.mxu0 0.0
    %1366 = vmatprep.subr.mxu0 0.0
    %1367 = vmatpush1.msra.mxu0 0.0
    %1368 = vmatprep.subr.mxu0 0.0
    %1369 = vmatpush1.msra.mxu0 0.0
    %1370 = vmatprep.subr.mxu0 0.0
    %1371 = vmatpush1.msra.mxu0 0.0
    %1372 = vmatprep.subr.mxu0 0.0
    %1373 = vmatpush1.msra.mxu0 0.0
    %1374 = vmatprep.subr.mxu0 0.0
    %1375 = vmatpush1.msra.mxu0 0.0
    %1376 = vmatprep.subr.mxu0 0.0
    %1377 = vmatpush1.msra.mxu0 0.0
    %1378 = vmatprep.subr.mxu0 0.0
    %1379 = vmatpush1.msra.mxu0 0.0
    %1380 = vmatprep.subr.mxu0 0.0
    %1381 = vmatpush1.msra.mxu0 0.0
    %1382 = vmatprep.subr.mxu0 0.0
    %1383 = vmatpush1.msra.mxu0 0.0
    %1384 = vmatprep.subr.mxu0 0.0
    %1385 = vmatpush1.msra.mxu0 0.0
    %1386 = vmatprep.mubr.f32.mxu0 0.0
    %1387 = vmatmul.mubr.f32.gmra.mrb[0].mxu0 %v1317
    %v1388 = vpop.f32.mrb[0].mxu0
    %v1389 = vadd.f32 0.0, %v1388
    %v1390 = vpop.f32.mrb[0].mxu0
    %1391 = vmatprep.mubr.f32.mxu0 0.0
    %1392 = vmatmul.mubr.f32.gmra.mrb[0].mxu0 %v1320
    %v1393 = vpop.f32.mrb[0].mxu0
    %v1394 = vadd.f32 0.0, %v1393
    %v1395 = vpop.f32.mrb[0].mxu0
    %1396 = vdwg.mxu0
    %v1397 = vadd.f32 %v975, %v1389
    %v1398 = vadd.f32 %v980, %v1394
    %1399 = vrot.lane.b32.xlu0 %v143, 104
    %v1400 = vpop.permute.xlu0 %1399
    %1401 = vrot.lane.b32.xlu0 %v139, 56
    %v1402 = vpop.permute.xlu0 %1401
    %v1403 = vsel %vm148, %v1400, 0
    %v1405 = vsel %vm148, %v1402, 0
    %1407 = vmatprep.subr.mxu0 0.0
    %1408 = vmatpush1.xpose.msra.mxu0 %v1405
    %1409 = vmatprep.subr.mxu0 0.0
    %1410 = vmatpush1.xpose.msra.mxu0 0.0
    %1411 = vmatprep.subr.mxu0 0.0
    %1412 = vmatpush1.xpose.msra.mxu0 0.0
    %1413 = vmatprep.subr.mxu0 0.0
    %1414 = vmatpush1.xpose.msra.mxu0 0.0
    %1415 = vmatprep.subr.mxu0 0.0
    %1416 = vmatpush1.xpose.msra.mxu0 0.0
    %1417 = vmatprep.subr.mxu0 0.0
    %1418 = vmatpush1.xpose.msra.mxu0 0.0
    %1419 = vmatprep.subr.mxu0 0.0
    %1420 = vmatpush1.xpose.msra.mxu0 0.0
    %1421 = vmatprep.subr.mxu0 0.0
    %1422 = vmatpush1.xpose.msra.mxu0 0.0
    %1423 = vmatprep.subr.mxu0 0.0
    %1424 = vmatpush1.xpose.msra.mxu0 0.0
    %1425 = vmatprep.subr.mxu0 0.0
    %1426 = vmatpush1.xpose.msra.mxu0 0.0
    %1427 = vmatprep.subr.mxu0 0.0
    %1428 = vmatpush1.xpose.msra.mxu0 0.0
    %1429 = vmatprep.subr.mxu0 0.0
    %1430 = vmatpush1.xpose.msra.mxu0 0.0
    %1431 = vmatprep.subr.mxu0 0.0
    %1432 = vmatpush1.xpose.msra.mxu0 0.0
    %1433 = vmatprep.subr.mxu0 0.0
    %1434 = vmatpush1.xpose.msra.mxu0 0.0
    %1435 = vmatprep.subr.mxu0 0.0
    %1436 = vmatpush1.xpose.msra.mxu0 0.0
    %1437 = vmatprep.subr.mxu0 0.0
    %1438 = vmatpush1.xpose.msra.mxu0 0.0
    %1439 = vmatprep.subr.mxu0 0.0
    %1440 = vmatpush1.xpose.msra.mxu0 0.0
    %1441 = vmatprep.subr.mxu0 0.0
    %1442 = vmatpush1.xpose.msra.mxu0 0.0
    %1443 = vmatprep.subr.mxu0 0.0
    %1444 = vmatpush1.xpose.msra.mxu0 0.0
    %1445 = vmatprep.subr.mxu0 0.0
    %1446 = vmatpush1.xpose.msra.mxu0 0.0
    %1447 = vmatprep.subr.mxu0 0.0
    %1448 = vmatpush1.xpose.msra.mxu0 0.0
    %1449 = vmatprep.subr.mxu0 0.0
    %1450 = vmatpush1.xpose.msra.mxu0 0.0
    %1451 = vmatprep.subr.mxu0 0.0
    %1452 = vmatpush1.xpose.msra.mxu0 0.0
    %1453 = vmatprep.subr.mxu0 0.0
    %1454 = vmatpush1.xpose.msra.mxu0 0.0
    %1455 = vmatprep.subr.mxu0 0.0
    %1456 = vmatpush1.xpose.msra.mxu0 0.0
    %1457 = vmatprep.subr.mxu0 0.0
    %1458 = vmatpush1.xpose.msra.mxu0 0.0
    %1459 = vmatprep.subr.mxu0 0.0
    %1460 = vmatpush1.xpose.msra.mxu0 0.0
    %1461 = vmatprep.subr.mxu0 0.0
    %1462 = vmatpush1.xpose.msra.mxu0 0.0
    %1463 = vmatprep.subr.mxu0 0.0
    %1464 = vmatpush1.xpose.msra.mxu0 0.0
    %1465 = vmatprep.subr.mxu0 0.0
    %1466 = vmatpush1.xpose.msra.mxu0 0.0
    %1467 = vmatprep.subr.mxu0 0.0
    %1468 = vmatpush1.xpose.msra.mxu0 0.0
    %1469 = vmatprep.subr.mxu0 0.0
    %1470 = vmatpush1.xpose.msra.mxu0 0.0
    %1471 = vmatprep.mubr.f32.mxu0 0.0
    %1472 = vmatmul.mubr.f32.gmra.mrb[0].mxu0 %v1403
    %v1473 = vpop.f32.mrb[0].mxu0
    %v1474 = vadd.f32 0.0, %v1473
    %v1475 = vpop.f32.mrb[0].mxu0
    %1476 = vdwg.mxu0
    %1477 = vrot.lane.b32.xlu0 %v144, 104
    %v1478 = vpop.permute.xlu0 %1477
    %1479 = vrot.lane.b32.xlu0 %v141, 56
    %v1480 = vpop.permute.xlu0 %1479
    %v1481 = vsel %vm148, %v1478, 0
    %v1483 = vsel %vm148, %v1480, 0
    %1485 = vmatprep.subr.mxu0 0.0
    %1486 = vmatpush1.xpose.msra.mxu0 %v1483
    %1487 = vmatprep.subr.mxu0 0.0
    %1488 = vmatpush1.xpose.msra.mxu0 0.0
    %1489 = vmatprep.subr.mxu0 0.0
    %1490 = vmatpush1.xpose.msra.mxu0 0.0
    %1491 = vmatprep.subr.mxu0 0.0
    %1492 = vmatpush1.xpose.msra.mxu0 0.0
    %1493 = vmatprep.subr.mxu0 0.0
    %1494 = vmatpush1.xpose.msra.mxu0 0.0
    %1495 = vmatprep.subr.mxu0 0.0
    %1496 = vmatpush1.xpose.msra.mxu0 0.0
    %1497 = vmatprep.subr.mxu0 0.0
    %1498 = vmatpush1.xpose.msra.mxu0 0.0
    %1499 = vmatprep.subr.mxu0 0.0
    %1500 = vmatpush1.xpose.msra.mxu0 0.0
    %1501 = vmatprep.subr.mxu0 0.0
    %1502 = vmatpush1.xpose.msra.mxu0 0.0
    %1503 = vmatprep.subr.mxu0 0.0
    %1504 = vmatpush1.xpose.msra.mxu0 0.0
    %1505 = vmatprep.subr.mxu0 0.0
    %1506 = vmatpush1.xpose.msra.mxu0 0.0
    %1507 = vmatprep.subr.mxu0 0.0
    %1508 = vmatpush1.xpose.msra.mxu0 0.0
    %1509 = vmatprep.subr.mxu0 0.0
    %1510 = vmatpush1.xpose.msra.mxu0 0.0
    %1511 = vmatprep.subr.mxu0 0.0
    %1512 = vmatpush1.xpose.msra.mxu0 0.0
    %1513 = vmatprep.subr.mxu0 0.0
    %1514 = vmatpush1.xpose.msra.mxu0 0.0
    %1515 = vmatprep.subr.mxu0 0.0
    %1516 = vmatpush1.xpose.msra.mxu0 0.0
    %1517 = vmatprep.subr.mxu0 0.0
    %1518 = vmatpush1.xpose.msra.mxu0 0.0
    %1519 = vmatprep.subr.mxu0 0.0
    %1520 = vmatpush1.xpose.msra.mxu0 0.0
    %1521 = vmatprep.subr.mxu0 0.0
    %1522 = vmatpush1.xpose.msra.mxu0 0.0
    %1523 = vmatprep.subr.mxu0 0.0
    %1524 = vmatpush1.xpose.msra.mxu0 0.0
    %1525 = vmatprep.subr.mxu0 0.0
    %1526 = vmatpush1.xpose.msra.mxu0 0.0
    %1527 = vmatprep.subr.mxu0 0.0
    %1528 = vmatpush1.xpose.msra.mxu0 0.0
    %1529 = vmatprep.subr.mxu0 0.0
    %1530 = vmatpush1.xpose.msra.mxu0 0.0
    %1531 = vmatprep.subr.mxu0 0.0
    %1532 = vmatpush1.xpose.msra.mxu0 0.0
    %1533 = vmatprep.subr.mxu0 0.0
    %1534 = vmatpush1.xpose.msra.mxu0 0.0
    %1535 = vmatprep.subr.mxu0 0.0
    %1536 = vmatpush1.xpose.msra.mxu0 0.0
    %1537 = vmatprep.subr.mxu0 0.0
    %1538 = vmatpush1.xpose.msra.mxu0 0.0
    %1539 = vmatprep.subr.mxu0 0.0
    %1540 = vmatpush1.xpose.msra.mxu0 0.0
    %1541 = vmatprep.subr.mxu0 0.0
    %1542 = vmatpush1.xpose.msra.mxu0 0.0
    %1543 = vmatprep.subr.mxu0 0.0
    %1544 = vmatpush1.xpose.msra.mxu0 0.0
    %1545 = vmatprep.subr.mxu0 0.0
    %1546 = vmatpush1.xpose.msra.mxu0 0.0
    %1547 = vmatprep.subr.mxu0 0.0
    %1548 = vmatpush1.xpose.msra.mxu0 0.0
    %1549 = vmatprep.mubr.f32.mxu0 0.0
    %1550 = vmatmul.mubr.f32.gmra.mrb[0].mxu0 %v1481
    %v1551 = vpop.f32.mrb[0].mxu0
    %v1552 = vadd.f32 0.0, %v1551
    %v1553 = vpop.f32.mrb[0].mxu0
    %1554 = vdwg.mxu0
    %v1555 = vsel %vm148, %v1474, -inf
    %1556 = vmax.xlane.f32.xlu0 %v1555
    %v1557 = vpop.xlane.xlu0 %1556
    %v1558 = vsel %vm148, %v1552, -inf
    %1559 = vmax.xlane.f32.xlu0 %v1558
    %v1560 = vpop.xlane.xlu0 %1559
    %v1561 = vsub.f32 %v1474, %v1557
    %v1562 = vsub.f32 %v1552, %v1560
    %v1563 = vmul.f32 %v1561, 1.442695
    %v1564 = vpow.pop %v1563
    %v1565 = vmul.f32 %v1562, 1.442695
    %v1566 = vpow.pop %v1565
    %v1567 = vsel %vm148, %v1564, 0.0
    %1568 = vadd.xlane.f32.xlu0 %v1567
    %v1569 = vpop.xlane.xlu0 %1568
    %v1570 = vsel %vm148, %v1566, 0.0
    %1571 = vadd.xlane.f32.xlu0 %v1570
    %v1572 = vpop.xlane.xlu0 %1571
    %v1573 = vrcp.pop %v1569
    %v1574 = vrcp.pop %v1572
    %v1575 = vmul.f32 %v1564, %v1573
    %v1576 = vmul.f32 %v1566, %v1574
    %1577 = vrot.lane.b32.xlu0 %v140, 88
    %v1578 = vpop.permute.xlu0 %1577
    %v1581 = vsel %vm148, %v1575, 0
    %1583 = vmatprep.subr.mxu0 0.0
    %1584 = vmatpush1.msra.mxu0 %v1578
    %1585 = vmatprep.subr.mxu0 0.0
    %1586 = vmatpush1.msra.mxu0 0.0
    %1587 = vmatprep.subr.mxu0 0.0
    %1588 = vmatpush1.msra.mxu0 0.0
    %1589 = vmatprep.subr.mxu0 0.0
    %1590 = vmatpush1.msra.mxu0 0.0
    %1591 = vmatprep.subr.mxu0 0.0
    %1592 = vmatpush1.msra.mxu0 0.0
    %1593 = vmatprep.subr.mxu0 0.0
    %1594 = vmatpush1.msra.mxu0 0.0
    %1595 = vmatprep.subr.mxu0 0.0
    %1596 = vmatpush1.msra.mxu0 0.0
    %1597 = vmatprep.subr.mxu0 0.0
    %1598 = vmatpush1.msra.mxu0 0.0
    %1599 = vmatprep.subr.mxu0 0.0
    %1600 = vmatpush1.msra.mxu0 0.0
    %1601 = vmatprep.subr.mxu0 0.0
    %1602 = vmatpush1.msra.mxu0 0.0
    %1603 = vmatprep.subr.mxu0 0.0
    %1604 = vmatpush1.msra.mxu0 0.0
    %1605 = vmatprep.subr.mxu0 0.0
    %1606 = vmatpush1.msra.mxu0 0.0
    %1607 = vmatprep.subr.mxu0 0.0
    %1608 = vmatpush1.msra.mxu0 0.0
    %1609 = vmatprep.subr.mxu0 0.0
    %1610 = vmatpush1.msra.mxu0 0.0
    %1611 = vmatprep.subr.mxu0 0.0
    %1612 = vmatpush1.msra.mxu0 0.0
    %1613 = vmatprep.subr.mxu0 0.0
    %1614 = vmatpush1.msra.mxu0 0.0
    %1615 = vmatprep.subr.mxu0 0.0
    %1616 = vmatpush1.msra.mxu0 0.0
    %1617 = vmatprep.subr.mxu0 0.0
    %1618 = vmatpush1.msra.mxu0 0.0
    %1619 = vmatprep.subr.mxu0 0.0
    %1620 = vmatpush1.msra.mxu0 0.0
    %1621 = vmatprep.subr.mxu0 0.0
    %1622 = vmatpush1.msra.mxu0 0.0
    %1623 = vmatprep.subr.mxu0 0.0
    %1624 = vmatpush1.msra.mxu0 0.0
    %1625 = vmatprep.subr.mxu0 0.0
    %1626 = vmatpush1.msra.mxu0 0.0
    %1627 = vmatprep.subr.mxu0 0.0
    %1628 = vmatpush1.msra.mxu0 0.0
    %1629 = vmatprep.subr.mxu0 0.0
    %1630 = vmatpush1.msra.mxu0 0.0
    %1631 = vmatprep.subr.mxu0 0.0
    %1632 = vmatpush1.msra.mxu0 0.0
    %1633 = vmatprep.subr.mxu0 0.0
    %1634 = vmatpush1.msra.mxu0 0.0
    %1635 = vmatprep.subr.mxu0 0.0
    %1636 = vmatpush1.msra.mxu0 0.0
    %1637 = vmatprep.subr.mxu0 0.0
    %1638 = vmatpush1.msra.mxu0 0.0
    %1639 = vmatprep.subr.mxu0 0.0
    %1640 = vmatpush1.msra.mxu0 0.0
    %1641 = vmatprep.subr.mxu0 0.0
    %1642 = vmatpush1.msra.mxu0 0.0
    %1643 = vmatprep.subr.mxu0 0.0
    %1644 = vmatpush1.msra.mxu0 0.0
    %1645 = vmatprep.subr.mxu0 0.0
    %1646 = vmatpush1.msra.mxu0 0.0
    %1647 = vmatprep.mubr.f32.mxu0 0.0
    %1648 = vmatmul.mubr.f32.gmra.mrb[0].mxu0 %v1581
    %v1649 = vpop.f32.mrb[0].mxu0
    %v1650 = vadd.f32 0.0, %v1649
    %v1651 = vpop.f32.mrb[0].mxu0
    %1652 = vdwg.mxu0
    %1653 = vrot.lane.b32.xlu0 %v142, 88
    %v1654 = vpop.permute.xlu0 %1653
    %v1657 = vsel %vm148, %v1576, 0
    %1659 = vmatprep.subr.mxu0 0.0
    %1660 = vmatpush1.msra.mxu0 %v1654
    %1661 = vmatprep.subr.mxu0 0.0
    %1662 = vmatpush1.msra.mxu0 0.0
    %1663 = vmatprep.subr.mxu0 0.0
    %1664 = vmatpush1.msra.mxu0 0.0
    %1665 = vmatprep.subr.mxu0 0.0
    %1666 = vmatpush1.msra.mxu0 0.0
    %1667 = vmatprep.subr.mxu0 0.0
    %1668 = vmatpush1.msra.mxu0 0.0
    %1669 = vmatprep.subr.mxu0 0.0
    %1670 = vmatpush1.msra.mxu0 0.0
    %1671 = vmatprep.subr.mxu0 0.0
    %1672 = vmatpush1.msra.mxu0 0.0
    %1673 = vmatprep.subr.mxu0 0.0
    %1674 = vmatpush1.msra.mxu0 0.0
    %1675 = vmatprep.subr.mxu0 0.0
    %1676 = vmatpush1.msra.mxu0 0.0
    %1677 = vmatprep.subr.mxu0 0.0
    %1678 = vmatpush1.msra.mxu0 0.0
    %1679 = vmatprep.subr.mxu0 0.0
    %1680 = vmatpush1.msra.mxu0 0.0
    %1681 = vmatprep.subr.mxu0 0.0
    %1682 = vmatpush1.msra.mxu0 0.0
    %1683 = vmatprep.subr.mxu0 0.0
    %1684 = vmatpush1.msra.mxu0 0.0
    %1685 = vmatprep.subr.mxu0 0.0
    %1686 = vmatpush1.msra.mxu0 0.0
    %1687 = vmatprep.subr.mxu0 0.0
    %1688 = vmatpush1.msra.mxu0 0.0
    %1689 = vmatprep.subr.mxu0 0.0
    %1690 = vmatpush1.msra.mxu0 0.0
    %1691 = vmatprep.subr.mxu0 0.0
    %1692 = vmatpush1.msra.mxu0 0.0
    %1693 = vmatprep.subr.mxu0 0.0
    %1694 = vmatpush1.msra.mxu0 0.0
    %1695 = vmatprep.subr.mxu0 0.0
    %1696 = vmatpush1.msra.mxu0 0.0
    %1697 = vmatprep.subr.mxu0 0.0
    %1698 = vmatpush1.msra.mxu0 0.0
    %1699 = vmatprep.subr.mxu0 0.0
    %1700 = vmatpush1.msra.mxu0 0.0
    %1701 = vmatprep.subr.mxu0 0.0
    %1702 = vmatpush1.msra.mxu0 0.0
    %1703 = vmatprep.subr.mxu0 0.0
    %1704 = vmatpush1.msra.mxu0 0.0
    %1705 = vmatprep.subr.mxu0 0.0
    %1706 = vmatpush1.msra.mxu0 0.0
    %1707 = vmatprep.subr.mxu0 0.0
    %1708 = vmatpush1.msra.mxu0 0.0
    %1709 = vmatprep.subr.mxu0 0.0
    %1710 = vmatpush1.msra.mxu0 0.0
    %1711 = vmatprep.subr.mxu0 0.0
    %1712 = vmatpush1.msra.mxu0 0.0
    %1713 = vmatprep.subr.mxu0 0.0
    %1714 = vmatpush1.msra.mxu0 0.0
    %1715 = vmatprep.subr.mxu0 0.0
    %1716 = vmatpush1.msra.mxu0 0.0
    %1717 = vmatprep.subr.mxu0 0.0
    %1718 = vmatpush1.msra.mxu0 0.0
    %1719 = vmatprep.subr.mxu0 0.0
    %1720 = vmatpush1.msra.mxu0 0.0
    %1721 = vmatprep.subr.mxu0 0.0
    %1722 = vmatpush1.msra.mxu0 0.0
    %1723 = vmatprep.mubr.f32.mxu0 0.0
    %1724 = vmatmul.mubr.f32.gmra.mrb[0].mxu0 %v1657
    %v1725 = vpop.f32.mrb[0].mxu0
    %v1726 = vadd.f32 0.0, %v1725
    %v1727 = vpop.f32.mrb[0].mxu0
    %1728 = vdwg.mxu0
    %v1729 = vld [vmem:[%s3 + $0x48] sm:$0xff]
    %v1730 = vld [vmem:[%s3 + $0x50] sm:$0xff]
    %v1731 = vld [vmem:[%s3 + $0x58] sm:$0xff]
    %v1733 = vsel %vm820, %v1650, 0
    %v1736 = vsel %vm820, %v1726, 0
    %1738 = vmatprep.subr.mxu0 0.0
    %1739 = vmatpush1.msra.mxu0 %v1729
    %1740 = vmatprep.subr.mxu0 0.0
    %1741 = vmatpush1.msra.mxu0 %v1730
    %1742 = vmatprep.subr.mxu0 0.0
    %1743 = vmatpush1.msra.mxu0 %v1731
    %1744 = vmatprep.subr.mxu0 0.0
    %1745 = vmatpush1.msra.mxu0 0.0
    %1746 = vmatprep.subr.mxu0 0.0
    %1747 = vmatpush1.msra.mxu0 0.0
    %1748 = vmatprep.subr.mxu0 0.0
    %1749 = vmatpush1.msra.mxu0 0.0
    %1750 = vmatprep.subr.mxu0 0.0
    %1751 = vmatpush1.msra.mxu0 0.0
    %1752 = vmatprep.subr.mxu0 0.0
    %1753 = vmatpush1.msra.mxu0 0.0
    %1754 = vmatprep.subr.mxu0 0.0
    %1755 = vmatpush1.msra.mxu0 0.0
    %1756 = vmatprep.subr.mxu0 0.0
    %1757 = vmatpush1.msra.mxu0 0.0
    %1758 = vmatprep.subr.mxu0 0.0
    %1759 = vmatpush1.msra.mxu0 0.0
    %1760 = vmatprep.subr.mxu0 0.0
    %1761 = vmatpush1.msra.mxu0 0.0
    %1762 = vmatprep.subr.mxu0 0.0
    %1763 = vmatpush1.msra.mxu0 0.0
    %1764 = vmatprep.subr.mxu0 0.0
    %1765 = vmatpush1.msra.mxu0 0.0
    %1766 = vmatprep.subr.mxu0 0.0
    %1767 = vmatpush1.msra.mxu0 0.0
    %1768 = vmatprep.subr.mxu0 0.0
    %1769 = vmatpush1.msra.mxu0 0.0
    %1770 = vmatprep.subr.mxu0 0.0
    %1771 = vmatpush1.msra.mxu0 0.0
    %1772 = vmatprep.subr.mxu0 0.0
    %1773 = vmatpush1.msra.mxu0 0.0
    %1774 = vmatprep.subr.mxu0 0.0
    %1775 = vmatpush1.msra.mxu0 0.0
    %1776 = vmatprep.subr.mxu0 0.0
    %1777 = vmatpush1.msra.mxu0 0.0
    %1778 = vmatprep.subr.mxu0 0.0
    %1779 = vmatpush1.msra.mxu0 0.0
    %1780 = vmatprep.subr.mxu0 0.0
    %1781 = vmatpush1.msra.mxu0 0.0
    %1782 = vmatprep.subr.mxu0 0.0
    %1783 = vmatpush1.msra.mxu0 0.0
    %1784 = vmatprep.subr.mxu0 0.0
    %1785 = vmatpush1.msra.mxu0 0.0
    %1786 = vmatprep.subr.mxu0 0.0
    %1787 = vmatpush1.msra.mxu0 0.0
    %1788 = vmatprep.subr.mxu0 0.0
    %1789 = vmatpush1.msra.mxu0 0.0
    %1790 = vmatprep.subr.mxu0 0.0
    %1791 = vmatpush1.msra.mxu0 0.0
    %1792 = vmatprep.subr.mxu0 0.0
    %1793 = vmatpush1.msra.mxu0 0.0
    %1794 = vmatprep.subr.mxu0 0.0
    %1795 = vmatpush1.msra.mxu0 0.0
    %1796 = vmatprep.subr.mxu0 0.0
    %1797 = vmatpush1.msra.mxu0 0.0
    %1798 = vmatprep.subr.mxu0 0.0
    %1799 = vmatpush1.msra.mxu0 0.0
    %1800 = vmatprep.subr.mxu0 0.0
    %1801 = vmatpush1.msra.mxu0 0.0
    %1802 = vmatprep.mubr.f32.mxu0 0.0
    %1803 = vmatmul.mubr.f32.gmra.mrb[0].mxu0 %v1733
    %v1804 = vpop.f32.mrb[0].mxu0
    %v1805 = vadd.f32 0.0, %v1804
    %v1806 = vpop.f32.mrb[0].mxu0
    %1807 = vmatprep.mubr.f32.mxu0 0.0
    %1808 = vmatmul.mubr.f32.gmra.mrb[0].mxu0 %v1736
    %v1809 = vpop.f32.mrb[0].mxu0
    %v1810 = vadd.f32 0.0, %v1809
    %v1811 = vpop.f32.mrb[0].mxu0
    %1812 = vdwg.mxu0
    %v1813 = vadd.f32 %v1397, %v1805
    %v1814 = vadd.f32 %v1398, %v1810
    %1815 = vrot.lane.b32.xlu0 %v143, 96
    %v1816 = vpop.permute.xlu0 %1815
    %1817 = vrot.lane.b32.xlu0 %v139, 48
    %v1818 = vpop.permute.xlu0 %1817
    %v1819 = vsel %vm148, %v1816, 0
    %v1821 = vsel %vm148, %v1818, 0
    %1823 = vmatprep.subr.mxu0 0.0
    %1824 = vmatpush1.xpose.msra.mxu0 %v1821
    %1825 = vmatprep.subr.mxu0 0.0
    %1826 = vmatpush1.xpose.msra.mxu0 0.0
    %1827 = vmatprep.subr.mxu0 0.0
    %1828 = vmatpush1.xpose.msra.mxu0 0.0
    %1829 = vmatprep.subr.mxu0 0.0
    %1830 = vmatpush1.xpose.msra.mxu0 0.0
    %1831 = vmatprep.subr.mxu0 0.0
    %1832 = vmatpush1.xpose.msra.mxu0 0.0
    %1833 = vmatprep.subr.mxu0 0.0
    %1834 = vmatpush1.xpose.msra.mxu0 0.0
    %1835 = vmatprep.subr.mxu0 0.0
    %1836 = vmatpush1.xpose.msra.mxu0 0.0
    %1837 = vmatprep.subr.mxu0 0.0
    %1838 = vmatpush1.xpose.msra.mxu0 0.0
    %1839 = vmatprep.subr.mxu0 0.0
    %1840 = vmatpush1.xpose.msra.mxu0 0.0
    %1841 = vmatprep.subr.mxu0 0.0
    %1842 = vmatpush1.xpose.msra.mxu0 0.0
    %1843 = vmatprep.subr.mxu0 0.0
    %1844 = vmatpush1.xpose.msra.mxu0 0.0
    %1845 = vmatprep.subr.mxu0 0.0
    %1846 = vmatpush1.xpose.msra.mxu0 0.0
    %1847 = vmatprep.subr.mxu0 0.0
    %1848 = vmatpush1.xpose.msra.mxu0 0.0
    %1849 = vmatprep.subr.mxu0 0.0
    %1850 = vmatpush1.xpose.msra.mxu0 0.0
    %1851 = vmatprep.subr.mxu0 0.0
    %1852 = vmatpush1.xpose.msra.mxu0 0.0
    %1853 = vmatprep.subr.mxu0 0.0
    %1854 = vmatpush1.xpose.msra.mxu0 0.0
    %1855 = vmatprep.subr.mxu0 0.0
    %1856 = vmatpush1.xpose.msra.mxu0 0.0
    %1857 = vmatprep.subr.mxu0 0.0
    %1858 = vmatpush1.xpose.msra.mxu0 0.0
    %1859 = vmatprep.subr.mxu0 0.0
    %1860 = vmatpush1.xpose.msra.mxu0 0.0
    %1861 = vmatprep.subr.mxu0 0.0
    %1862 = vmatpush1.xpose.msra.mxu0 0.0
    %1863 = vmatprep.subr.mxu0 0.0
    %1864 = vmatpush1.xpose.msra.mxu0 0.0
    %1865 = vmatprep.subr.mxu0 0.0
    %1866 = vmatpush1.xpose.msra.mxu0 0.0
    %1867 = vmatprep.subr.mxu0 0.0
    %1868 = vmatpush1.xpose.msra.mxu0 0.0
    %1869 = vmatprep.subr.mxu0 0.0
    %1870 = vmatpush1.xpose.msra.mxu0 0.0
    %1871 = vmatprep.subr.mxu0 0.0
    %1872 = vmatpush1.xpose.msra.mxu0 0.0
    %1873 = vmatprep.subr.mxu0 0.0
    %1874 = vmatpush1.xpose.msra.mxu0 0.0
    %1875 = vmatprep.subr.mxu0 0.0
    %1876 = vmatpush1.xpose.msra.mxu0 0.0
    %1877 = vmatprep.subr.mxu0 0.0
    %1878 = vmatpush1.xpose.msra.mxu0 0.0
    %1879 = vmatprep.subr.mxu0 0.0
    %1880 = vmatpush1.xpose.msra.mxu0 0.0
    %1881 = vmatprep.subr.mxu0 0.0
    %1882 = vmatpush1.xpose.msra.mxu0 0.0
    %1883 = vmatprep.subr.mxu0 0.0
    %1884 = vmatpush1.xpose.msra.mxu0 0.0
    %1885 = vmatprep.subr.mxu0 0.0
    %1886 = vmatpush1.xpose.msra.mxu0 0.0
    %1887 = vmatprep.mubr.f32.mxu0 0.0
    %1888 = vmatmul.mubr.f32.gmra.mrb[0].mxu0 %v1819
    %v1889 = vpop.f32.mrb[0].mxu0
    %v1890 = vadd.f32 0.0, %v1889
    %v1891 = vpop.f32.mrb[0].mxu0
    %1892 = vdwg.mxu0
    %1893 = vrot.lane.b32.xlu0 %v144, 96
    %v1894 = vpop.permute.xlu0 %1893
    %1895 = vrot.lane.b32.xlu0 %v141, 48
    %v1896 = vpop.permute.xlu0 %1895
    %v1897 = vsel %vm148, %v1894, 0
    %v1899 = vsel %vm148, %v1896, 0
    %1901 = vmatprep.subr.mxu0 0.0
    %1902 = vmatpush1.xpose.msra.mxu0 %v1899
    %1903 = vmatprep.subr.mxu0 0.0
    %1904 = vmatpush1.xpose.msra.mxu0 0.0
    %1905 = vmatprep.subr.mxu0 0.0
    %1906 = vmatpush1.xpose.msra.mxu0 0.0
    %1907 = vmatprep.subr.mxu0 0.0
    %1908 = vmatpush1.xpose.msra.mxu0 0.0
    %1909 = vmatprep.subr.mxu0 0.0
    %1910 = vmatpush1.xpose.msra.mxu0 0.0
    %1911 = vmatprep.subr.mxu0 0.0
    %1912 = vmatpush1.xpose.msra.mxu0 0.0
    %1913 = vmatprep.subr.mxu0 0.0
    %1914 = vmatpush1.xpose.msra.mxu0 0.0
    %1915 = vmatprep.subr.mxu0 0.0
    %1916 = vmatpush1.xpose.msra.mxu0 0.0
    %1917 = vmatprep.subr.mxu0 0.0
    %1918 = vmatpush1.xpose.msra.mxu0 0.0
    %1919 = vmatprep.subr.mxu0 0.0
    %1920 = vmatpush1.xpose.msra.mxu0 0.0
    %1921 = vmatprep.subr.mxu0 0.0
    %1922 = vmatpush1.xpose.msra.mxu0 0.0
    %1923 = vmatprep.subr.mxu0 0.0
    %1924 = vmatpush1.xpose.msra.mxu0 0.0
    %1925 = vmatprep.subr.mxu0 0.0
    %1926 = vmatpush1.xpose.msra.mxu0 0.0
    %1927 = vmatprep.subr.mxu0 0.0
    %1928 = vmatpush1.xpose.msra.mxu0 0.0
    %1929 = vmatprep.subr.mxu0 0.0
    %1930 = vmatpush1.xpose.msra.mxu0 0.0
    %1931 = vmatprep.subr.mxu0 0.0
    %1932 = vmatpush1.xpose.msra.mxu0 0.0
    %1933 = vmatprep.subr.mxu0 0.0
    %1934 = vmatpush1.xpose.msra.mxu0 0.0
    %1935 = vmatprep.subr.mxu0 0.0
    %1936 = vmatpush1.xpose.msra.mxu0 0.0
    %1937 = vmatprep.subr.mxu0 0.0
    %1938 = vmatpush1.xpose.msra.mxu0 0.0
    %1939 = vmatprep.subr.mxu0 0.0
    %1940 = vmatpush1.xpose.msra.mxu0 0.0
    %1941 = vmatprep.subr.mxu0 0.0
    %1942 = vmatpush1.xpose.msra.mxu0 0.0
    %1943 = vmatprep.subr.mxu0 0.0
    %1944 = vmatpush1.xpose.msra.mxu0 0.0
    %1945 = vmatprep.subr.mxu0 0.0
    %1946 = vmatpush1.xpose.msra.mxu0 0.0
    %1947 = vmatprep.subr.mxu0 0.0
    %1948 = vmatpush1.xpose.msra.mxu0 0.0
    %1949 = vmatprep.subr.mxu0 0.0
    %1950 = vmatpush1.xpose.msra.mxu0 0.0
    %1951 = vmatprep.subr.mxu0 0.0
    %1952 = vmatpush1.xpose.msra.mxu0 0.0
    %1953 = vmatprep.subr.mxu0 0.0
    %1954 = vmatpush1.xpose.msra.mxu0 0.0
    %1955 = vmatprep.subr.mxu0 0.0
    %1956 = vmatpush1.xpose.msra.mxu0 0.0
    %1957 = vmatprep.subr.mxu0 0.0
    %1958 = vmatpush1.xpose.msra.mxu0 0.0
    %1959 = vmatprep.subr.mxu0 0.0
    %1960 = vmatpush1.xpose.msra.mxu0 0.0
    %1961 = vmatprep.subr.mxu0 0.0
    %1962 = vmatpush1.xpose.msra.mxu0 0.0
    %1963 = vmatprep.subr.mxu0 0.0
    %1964 = vmatpush1.xpose.msra.mxu0 0.0
    %1965 = vmatprep.mubr.f32.mxu0 0.0
    %1966 = vmatmul.mubr.f32.gmra.mrb[0].mxu0 %v1897
    %v1967 = vpop.f32.mrb[0].mxu0
    %v1968 = vadd.f32 0.0, %v1967
    %v1969 = vpop.f32.mrb[0].mxu0
    %1970 = vdwg.mxu0
    %v1971 = vsel %vm148, %v1890, -inf
    %1972 = vmax.xlane.f32.xlu0 %v1971
    %v1973 = vpop.xlane.xlu0 %1972
    %v1974 = vsel %vm148, %v1968, -inf
    %1975 = vmax.xlane.f32.xlu0 %v1974
    %v1976 = vpop.xlane.xlu0 %1975
    %v1977 = vsub.f32 %v1890, %v1973
    %v1978 = vsub.f32 %v1968, %v1976
    %v1979 = vmul.f32 %v1977, 1.442695
    %v1980 = vpow.pop %v1979
    %v1981 = vmul.f32 %v1978, 1.442695
    %v1982 = vpow.pop %v1981
    %v1983 = vsel %vm148, %v1980, 0.0
    %1984 = vadd.xlane.f32.xlu0 %v1983
    %v1985 = vpop.xlane.xlu0 %1984
    %v1986 = vsel %vm148, %v1982, 0.0
    %1987 = vadd.xlane.f32.xlu0 %v1986
    %v1988 = vpop.xlane.xlu0 %1987
    %v1989 = vrcp.pop %v1985
    %v1990 = vrcp.pop %v1988
    %v1991 = vmul.f32 %v1980, %v1989
    %v1992 = vmul.f32 %v1982, %v1990
    %1993 = vrot.lane.b32.xlu0 %v140, 64
    %v1994 = vpop.permute.xlu0 %1993
    %v1997 = vsel %vm148, %v1991, 0
    %1999 = vmatprep.subr.mxu0 0.0
    %2000 = vmatpush1.msra.mxu0 %v1994
    %2001 = vmatprep.subr.mxu0 0.0
    %2002 = vmatpush1.msra.mxu0 0.0
    %2003 = vmatprep.subr.mxu0 0.0
    %2004 = vmatpush1.msra.mxu0 0.0
    %2005 = vmatprep.subr.mxu0 0.0
    %2006 = vmatpush1.msra.mxu0 0.0
    %2007 = vmatprep.subr.mxu0 0.0
    %2008 = vmatpush1.msra.mxu0 0.0
    %2009 = vmatprep.subr.mxu0 0.0
    %2010 = vmatpush1.msra.mxu0 0.0
    %2011 = vmatprep.subr.mxu0 0.0
    %2012 = vmatpush1.msra.mxu0 0.0
    %2013 = vmatprep.subr.mxu0 0.0
    %2014 = vmatpush1.msra.mxu0 0.0
    %2015 = vmatprep.subr.mxu0 0.0
    %2016 = vmatpush1.msra.mxu0 0.0
    %2017 = vmatprep.subr.mxu0 0.0
    %2018 = vmatpush1.msra.mxu0 0.0
    %2019 = vmatprep.subr.mxu0 0.0
    %2020 = vmatpush1.msra.mxu0 0.0
    %2021 = vmatprep.subr.mxu0 0.0
    %2022 = vmatpush1.msra.mxu0 0.0
    %2023 = vmatprep.subr.mxu0 0.0
    %2024 = vmatpush1.msra.mxu0 0.0
    %2025 = vmatprep.subr.mxu0 0.0
    %2026 = vmatpush1.msra.mxu0 0.0
    %2027 = vmatprep.subr.mxu0 0.0
    %2028 = vmatpush1.msra.mxu0 0.0
    %2029 = vmatprep.subr.mxu0 0.0
    %2030 = vmatpush1.msra.mxu0 0.0
    %2031 = vmatprep.subr.mxu0 0.0
    %2032 = vmatpush1.msra.mxu0 0.0
    %2033 = vmatprep.subr.mxu0 0.0
    %2034 = vmatpush1.msra.mxu0 0.0
    %2035 = vmatprep.subr.mxu0 0.0
    %2036 = vmatpush1.msra.mxu0 0.0
    %2037 = vmatprep.subr.mxu0 0.0
    %2038 = vmatpush1.msra.mxu0 0.0
    %2039 = vmatprep.subr.mxu0 0.0
    %2040 = vmatpush1.msra.mxu0 0.0
    %2041 = vmatprep.subr.mxu0 0.0
    %2042 = vmatpush1.msra.mxu0 0.0
    %2043 = vmatprep.subr.mxu0 0.0
    %2044 = vmatpush1.msra.mxu0 0.0
    %2045 = vmatprep.subr.mxu0 0.0
    %2046 = vmatpush1.msra.mxu0 0.0
    %2047 = vmatprep.subr.mxu0 0.0
    %2048 = vmatpush1.msra.mxu0 0.0
    %2049 = vmatprep.subr.mxu0 0.0
    %2050 = vmatpush1.msra.mxu0 0.0
    %2051 = vmatprep.subr.mxu0 0.0
    %2052 = vmatpush1.msra.mxu0 0.0
    %2053 = vmatprep.subr.mxu0 0.0
    %2054 = vmatpush1.msra.mxu0 0.0
    %2055 = vmatprep.subr.mxu0 0.0
    %2056 = vmatpush1.msra.mxu0 0.0
    %2057 = vmatprep.subr.mxu0 0.0
    %2058 = vmatpush1.msra.mxu0 0.0
    %2059 = vmatprep.subr.mxu0 0.0
    %2060 = vmatpush1.msra.mxu0 0.0
    %2061 = vmatprep.subr.mxu0 0.0
    %2062 = vmatpush1.msra.mxu0 0.0
    %2063 = vmatprep.mubr.f32.mxu0 0.0
    %2064 = vmatmul.mubr.f32.gmra.mrb[0].mxu0 %v1997
    %v2065 = vpop.f32.mrb[0].mxu0
    %v2066 = vadd.f32 0.0, %v2065
    %v2067 = vpop.f32.mrb[0].mxu0
    %2068 = vdwg.mxu0
    %2069 = vrot.lane.b32.xlu0 %v142, 64
    %v2070 = vpop.permute.xlu0 %2069
    %v2073 = vsel %vm148, %v1992, 0
    %2075 = vmatprep.subr.mxu0 0.0
    %2076 = vmatpush1.msra.mxu0 %v2070
    %2077 = vmatprep.subr.mxu0 0.0
    %2078 = vmatpush1.msra.mxu0 0.0
    %2079 = vmatprep.subr.mxu0 0.0
    %2080 = vmatpush1.msra.mxu0 0.0
    %2081 = vmatprep.subr.mxu0 0.0
    %2082 = vmatpush1.msra.mxu0 0.0
    %2083 = vmatprep.subr.mxu0 0.0
    %2084 = vmatpush1.msra.mxu0 0.0
    %2085 = vmatprep.subr.mxu0 0.0
    %2086 = vmatpush1.msra.mxu0 0.0
    %2087 = vmatprep.subr.mxu0 0.0
    %2088 = vmatpush1.msra.mxu0 0.0
    %2089 = vmatprep.subr.mxu0 0.0
    %2090 = vmatpush1.msra.mxu0 0.0
    %2091 = vmatprep.subr.mxu0 0.0
    %2092 = vmatpush1.msra.mxu0 0.0
    %2093 = vmatprep.subr.mxu0 0.0
    %2094 = vmatpush1.msra.mxu0 0.0
    %2095 = vmatprep.subr.mxu0 0.0
    %2096 = vmatpush1.msra.mxu0 0.0
    %2097 = vmatprep.subr.mxu0 0.0
    %2098 = vmatpush1.msra.mxu0 0.0
    %2099 = vmatprep.subr.mxu0 0.0
    %2100 = vmatpush1.msra.mxu0 0.0
    %2101 = vmatprep.subr.mxu0 0.0
    %2102 = vmatpush1.msra.mxu0 0.0
    %2103 = vmatprep.subr.mxu0 0.0
    %2104 = vmatpush1.msra.mxu0 0.0
    %2105 = vmatprep.subr.mxu0 0.0
    %2106 = vmatpush1.msra.mxu0 0.0
    %2107 = vmatprep.subr.mxu0 0.0
    %2108 = vmatpush1.msra.mxu0 0.0
    %2109 = vmatprep.subr.mxu0 0.0
    %2110 = vmatpush1.msra.mxu0 0.0
    %2111 = vmatprep.subr.mxu0 0.0
    %2112 = vmatpush1.msra.mxu0 0.0
    %2113 = vmatprep.subr.mxu0 0.0
    %2114 = vmatpush1.msra.mxu0 0.0
    %2115 = vmatprep.subr.mxu0 0.0
    %2116 = vmatpush1.msra.mxu0 0.0
    %2117 = vmatprep.subr.mxu0 0.0
    %2118 = vmatpush1.msra.mxu0 0.0
    %2119 = vmatprep.subr.mxu0 0.0
    %2120 = vmatpush1.msra.mxu0 0.0
    %2121 = vmatprep.subr.mxu0 0.0
    %2122 = vmatpush1.msra.mxu0 0.0
    %2123 = vmatprep.subr.mxu0 0.0
    %2124 = vmatpush1.msra.mxu0 0.0
    %2125 = vmatprep.subr.mxu0 0.0
    %2126 = vmatpush1.msra.mxu0 0.0
    %2127 = vmatprep.subr.mxu0 0.0
    %2128 = vmatpush1.msra.mxu0 0.0
    %2129 = vmatprep.subr.mxu0 0.0
    %2130 = vmatpush1.msra.mxu0 0.0
    %2131 = vmatprep.subr.mxu0 0.0
    %2132 = vmatpush1.msra.mxu0 0.0
    %2133 = vmatprep.subr.mxu0 0.0
    %2134 = vmatpush1.msra.mxu0 0.0
    %2135 = vmatprep.subr.mxu0 0.0
    %2136 = vmatpush1.msra.mxu0 0.0
    %2137 = vmatprep.subr.mxu0 0.0
    %2138 = vmatpush1.msra.mxu0 0.0
    %2139 = vmatprep.mubr.f32.mxu0 0.0
    %2140 = vmatmul.mubr.f32.gmra.mrb[0].mxu0 %v2073
    %v2141 = vpop.f32.mrb[0].mxu0
    %v2142 = vadd.f32 0.0, %v2141
    %v2143 = vpop.f32.mrb[0].mxu0
    %2144 = vdwg.mxu0
    %v2145 = vld [vmem:[%s3 + $0x60] sm:$0xff]
    %v2146 = vld [vmem:[%s3 + $0x68] sm:$0xff]
    %v2147 = vld [vmem:[%s3 + $0x70] sm:$0xff]
    %v2149 = vsel %vm820, %v2066, 0
    %v2152 = vsel %vm820, %v2142, 0
    %2154 = vmatprep.subr.mxu0 0.0
    %2155 = vmatpush1.msra.mxu0 %v2145
    %2156 = vmatprep.subr.mxu0 0.0
    %2157 = vmatpush1.msra.mxu0 %v2146
    %2158 = vmatprep.subr.mxu0 0.0
    %2159 = vmatpush1.msra.mxu0 %v2147
    %2160 = vmatprep.subr.mxu0 0.0
    %2161 = vmatpush1.msra.mxu0 0.0
    %2162 = vmatprep.subr.mxu0 0.0
    %2163 = vmatpush1.msra.mxu0 0.0
    %2164 = vmatprep.subr.mxu0 0.0
    %2165 = vmatpush1.msra.mxu0 0.0
    %2166 = vmatprep.subr.mxu0 0.0
    %2167 = vmatpush1.msra.mxu0 0.0
    %2168 = vmatprep.subr.mxu0 0.0
    %2169 = vmatpush1.msra.mxu0 0.0
    %2170 = vmatprep.subr.mxu0 0.0
    %2171 = vmatpush1.msra.mxu0 0.0
    %2172 = vmatprep.subr.mxu0 0.0
    %2173 = vmatpush1.msra.mxu0 0.0
    %2174 = vmatprep.subr.mxu0 0.0
    %2175 = vmatpush1.msra.mxu0 0.0
    %2176 = vmatprep.subr.mxu0 0.0
    %2177 = vmatpush1.msra.mxu0 0.0
    %2178 = vmatprep.subr.mxu0 0.0
    %2179 = vmatpush1.msra.mxu0 0.0
    %2180 = vmatprep.subr.mxu0 0.0
    %2181 = vmatpush1.msra.mxu0 0.0
    %2182 = vmatprep.subr.mxu0 0.0
    %2183 = vmatpush1.msra.mxu0 0.0
    %2184 = vmatprep.subr.mxu0 0.0
    %2185 = vmatpush1.msra.mxu0 0.0
    %2186 = vmatprep.subr.mxu0 0.0
    %2187 = vmatpush1.msra.mxu0 0.0
    %2188 = vmatprep.subr.mxu0 0.0
    %2189 = vmatpush1.msra.mxu0 0.0
    %2190 = vmatprep.subr.mxu0 0.0
    %2191 = vmatpush1.msra.mxu0 0.0
    %2192 = vmatprep.subr.mxu0 0.0
    %2193 = vmatpush1.msra.mxu0 0.0
    %2194 = vmatprep.subr.mxu0 0.0
    %2195 = vmatpush1.msra.mxu0 0.0
    %2196 = vmatprep.subr.mxu0 0.0
    %2197 = vmatpush1.msra.mxu0 0.0
    %2198 = vmatprep.subr.mxu0 0.0
    %2199 = vmatpush1.msra.mxu0 0.0
    %2200 = vmatprep.subr.mxu0 0.0
    %2201 = vmatpush1.msra.mxu0 0.0
    %2202 = vmatprep.subr.mxu0 0.0
    %2203 = vmatpush1.msra.mxu0 0.0
    %2204 = vmatprep.subr.mxu0 0.0
    %2205 = vmatpush1.msra.mxu0 0.0
    %2206 = vmatprep.subr.mxu0 0.0
    %2207 = vmatpush1.msra.mxu0 0.0
    %2208 = vmatprep.subr.mxu0 0.0
    %2209 = vmatpush1.msra.mxu0 0.0
    %2210 = vmatprep.subr.mxu0 0.0
    %2211 = vmatpush1.msra.mxu0 0.0
    %2212 = vmatprep.subr.mxu0 0.0
    %2213 = vmatpush1.msra.mxu0 0.0
    %2214 = vmatprep.subr.mxu0 0.0
    %2215 = vmatpush1.msra.mxu0 0.0
    %2216 = vmatprep.subr.mxu0 0.0
    %2217 = vmatpush1.msra.mxu0 0.0
    %2218 = vmatprep.mubr.f32.mxu0 0.0
    %2219 = vmatmul.mubr.f32.gmra.mrb[0].mxu0 %v2149
    %v2220 = vpop.f32.mrb[0].mxu0
    %v2221 = vadd.f32 0.0, %v2220
    %v2222 = vpop.f32.mrb[0].mxu0
    %2223 = vmatprep.mubr.f32.mxu0 0.0
    %2224 = vmatmul.mubr.f32.gmra.mrb[0].mxu0 %v2152
    %v2225 = vpop.f32.mrb[0].mxu0
    %v2226 = vadd.f32 0.0, %v2225
    %v2227 = vpop.f32.mrb[0].mxu0
    %2228 = vdwg.mxu0
    %v2229 = vadd.f32 %v1813, %v2221
    %v2230 = vadd.f32 %v1814, %v2226
    %2231 = vrot.lane.b32.xlu0 %v143, 88
    %v2232 = vpop.permute.xlu0 %2231
    %2233 = vrot.lane.b32.xlu0 %v139, 40
    %v2234 = vpop.permute.xlu0 %2233
    %v2235 = vsel %vm148, %v2232, 0
    %v2237 = vsel %vm148, %v2234, 0
    %2239 = vmatprep.subr.mxu0 0.0
    %2240 = vmatpush1.xpose.msra.mxu0 %v2237
    %2241 = vmatprep.subr.mxu0 0.0
    %2242 = vmatpush1.xpose.msra.mxu0 0.0
    %2243 = vmatprep.subr.mxu0 0.0
    %2244 = vmatpush1.xpose.msra.mxu0 0.0
    %2245 = vmatprep.subr.mxu0 0.0
    %2246 = vmatpush1.xpose.msra.mxu0 0.0
    %2247 = vmatprep.subr.mxu0 0.0
    %2248 = vmatpush1.xpose.msra.mxu0 0.0
    %2249 = vmatprep.subr.mxu0 0.0
    %2250 = vmatpush1.xpose.msra.mxu0 0.0
    %2251 = vmatprep.subr.mxu0 0.0
    %2252 = vmatpush1.xpose.msra.mxu0 0.0
    %2253 = vmatprep.subr.mxu0 0.0
    %2254 = vmatpush1.xpose.msra.mxu0 0.0
    %2255 = vmatprep.subr.mxu0 0.0
    %2256 = vmatpush1.xpose.msra.mxu0 0.0
    %2257 = vmatprep.subr.mxu0 0.0
    %2258 = vmatpush1.xpose.msra.mxu0 0.0
    %2259 = vmatprep.subr.mxu0 0.0
    %2260 = vmatpush1.xpose.msra.mxu0 0.0
    %2261 = vmatprep.subr.mxu0 0.0
    %2262 = vmatpush1.xpose.msra.mxu0 0.0
    %2263 = vmatprep.subr.mxu0 0.0
    %2264 = vmatpush1.xpose.msra.mxu0 0.0
    %2265 = vmatprep.subr.mxu0 0.0
    %2266 = vmatpush1.xpose.msra.mxu0 0.0
    %2267 = vmatprep.subr.mxu0 0.0
    %2268 = vmatpush1.xpose.msra.mxu0 0.0
    %2269 = vmatprep.subr.mxu0 0.0
    %2270 = vmatpush1.xpose.msra.mxu0 0.0
    %2271 = vmatprep.subr.mxu0 0.0
    %2272 = vmatpush1.xpose.msra.mxu0 0.0
    %2273 = vmatprep.subr.mxu0 0.0
    %2274 = vmatpush1.xpose.msra.mxu0 0.0
    %2275 = vmatprep.subr.mxu0 0.0
    %2276 = vmatpush1.xpose.msra.mxu0 0.0
    %2277 = vmatprep.subr.mxu0 0.0
    %2278 = vmatpush1.xpose.msra.mxu0 0.0
    %2279 = vmatprep.subr.mxu0 0.0
    %2280 = vmatpush1.xpose.msra.mxu0 0.0
    %2281 = vmatprep.subr.mxu0 0.0
    %2282 = vmatpush1.xpose.msra.mxu0 0.0
    %2283 = vmatprep.subr.mxu0 0.0
    %2284 = vmatpush1.xpose.msra.mxu0 0.0
    %2285 = vmatprep.subr.mxu0 0.0
    %2286 = vmatpush1.xpose.msra.mxu0 0.0
    %2287 = vmatprep.subr.mxu0 0.0
    %2288 = vmatpush1.xpose.msra.mxu0 0.0
    %2289 = vmatprep.subr.mxu0 0.0
    %2290 = vmatpush1.xpose.msra.mxu0 0.0
    %2291 = vmatprep.subr.mxu0 0.0
    %2292 = vmatpush1.xpose.msra.mxu0 0.0
    %2293 = vmatprep.subr.mxu0 0.0
    %2294 = vmatpush1.xpose.msra.mxu0 0.0
    %2295 = vmatprep.subr.mxu0 0.0
    %2296 = vmatpush1.xpose.msra.mxu0 0.0
    %2297 = vmatprep.subr.mxu0 0.0
    %2298 = vmatpush1.xpose.msra.mxu0 0.0
    %2299 = vmatprep.subr.mxu0 0.0
    %2300 = vmatpush1.xpose.msra.mxu0 0.0
    %2301 = vmatprep.subr.mxu0 0.0
    %2302 = vmatpush1.xpose.msra.mxu0 0.0
    %2303 = vmatprep.mubr.f32.mxu0 0.0
    %2304 = vmatmul.mubr.f32.gmra.mrb[0].mxu0 %v2235
    %v2305 = vpop.f32.mrb[0].mxu0
    %v2306 = vadd.f32 0.0, %v2305
    %v2307 = vpop.f32.mrb[0].mxu0
    %2308 = vdwg.mxu0
    %2309 = vrot.lane.b32.xlu0 %v144, 88
    %v2310 = vpop.permute.xlu0 %2309
    %2311 = vrot.lane.b32.xlu0 %v141, 40
    %v2312 = vpop.permute.xlu0 %2311
    %v2313 = vsel %vm148, %v2310, 0
    %v2315 = vsel %vm148, %v2312, 0
    %2317 = vmatprep.subr.mxu0 0.0
    %2318 = vmatpush1.xpose.msra.mxu0 %v2315
    %2319 = vmatprep.subr.mxu0 0.0
    %2320 = vmatpush1.xpose.msra.mxu0 0.0
    %2321 = vmatprep.subr.mxu0 0.0
    %2322 = vmatpush1.xpose.msra.mxu0 0.0
    %2323 = vmatprep.subr.mxu0 0.0
    %2324 = vmatpush1.xpose.msra.mxu0 0.0
    %2325 = vmatprep.subr.mxu0 0.0
    %2326 = vmatpush1.xpose.msra.mxu0 0.0
    %2327 = vmatprep.subr.mxu0 0.0
    %2328 = vmatpush1.xpose.msra.mxu0 0.0
    %2329 = vmatprep.subr.mxu0 0.0
    %2330 = vmatpush1.xpose.msra.mxu0 0.0
    %2331 = vmatprep.subr.mxu0 0.0
    %2332 = vmatpush1.xpose.msra.mxu0 0.0
    %2333 = vmatprep.subr.mxu0 0.0
    %2334 = vmatpush1.xpose.msra.mxu0 0.0
    %2335 = vmatprep.subr.mxu0 0.0
    %2336 = vmatpush1.xpose.msra.mxu0 0.0
    %2337 = vmatprep.subr.mxu0 0.0
    %2338 = vmatpush1.xpose.msra.mxu0 0.0
    %2339 = vmatprep.subr.mxu0 0.0
    %2340 = vmatpush1.xpose.msra.mxu0 0.0
    %2341 = vmatprep.subr.mxu0 0.0
    %2342 = vmatpush1.xpose.msra.mxu0 0.0
    %2343 = vmatprep.subr.mxu0 0.0
    %2344 = vmatpush1.xpose.msra.mxu0 0.0
    %2345 = vmatprep.subr.mxu0 0.0
    %2346 = vmatpush1.xpose.msra.mxu0 0.0
    %2347 = vmatprep.subr.mxu0 0.0
    %2348 = vmatpush1.xpose.msra.mxu0 0.0
    %2349 = vmatprep.subr.mxu0 0.0
    %2350 = vmatpush1.xpose.msra.mxu0 0.0
    %2351 = vmatprep.subr.mxu0 0.0
    %2352 = vmatpush1.xpose.msra.mxu0 0.0
    %2353 = vmatprep.subr.mxu0 0.0
    %2354 = vmatpush1.xpose.msra.mxu0 0.0
    %2355 = vmatprep.subr.mxu0 0.0
    %2356 = vmatpush1.xpose.msra.mxu0 0.0
    %2357 = vmatprep.subr.mxu0 0.0
    %2358 = vmatpush1.xpose.msra.mxu0 0.0
    %2359 = vmatprep.subr.mxu0 0.0
    %2360 = vmatpush1.xpose.msra.mxu0 0.0
    %2361 = vmatprep.subr.mxu0 0.0
    %2362 = vmatpush1.xpose.msra.mxu0 0.0
    %2363 = vmatprep.subr.mxu0 0.0
    %2364 = vmatpush1.xpose.msra.mxu0 0.0
    %2365 = vmatprep.subr.mxu0 0.0
    %2366 = vmatpush1.xpose.msra.mxu0 0.0
    %2367 = vmatprep.subr.mxu0 0.0
    %2368 = vmatpush1.xpose.msra.mxu0 0.0
    %2369 = vmatprep.subr.mxu0 0.0
    %2370 = vmatpush1.xpose.msra.mxu0 0.0
    %2371 = vmatprep.subr.mxu0 0.0
    %2372 = vmatpush1.xpose.msra.mxu0 0.0
    %2373 = vmatprep.subr.mxu0 0.0
    %2374 = vmatpush1.xpose.msra.mxu0 0.0
    %2375 = vmatprep.subr.mxu0 0.0
    %2376 = vmatpush1.xpose.msra.mxu0 0.0
    %2377 = vmatprep.subr.mxu0 0.0
    %2378 = vmatpush1.xpose.msra.mxu0 0.0
    %2379 = vmatprep.subr.mxu0 0.0
    %2380 = vmatpush1.xpose.msra.mxu0 0.0
    %2381 = vmatprep.mubr.f32.mxu0 0.0
    %2382 = vmatmul.mubr.f32.gmra.mrb[0].mxu0 %v2313
    %v2383 = vpop.f32.mrb[0].mxu0
    %v2384 = vadd.f32 0.0, %v2383
    %v2385 = vpop.f32.mrb[0].mxu0
    %2386 = vdwg.mxu0
    %v2387 = vsel %vm148, %v2306, -inf
    %2388 = vmax.xlane.f32.xlu0 %v2387
    %v2389 = vpop.xlane.xlu0 %2388
    %v2390 = vsel %vm148, %v2384, -inf
    %2391 = vmax.xlane.f32.xlu0 %v2390
    %v2392 = vpop.xlane.xlu0 %2391
    %v2393 = vsub.f32 %v2306, %v2389
    %v2394 = vsub.f32 %v2384, %v2392
    %v2395 = vmul.f32 %v2393, 1.442695
    %v2396 = vpow.pop %v2395
    %v2397 = vmul.f32 %v2394, 1.442695
    %v2398 = vpow.pop %v2397
    %v2399 = vsel %vm148, %v2396, 0.0
    %2400 = vadd.xlane.f32.xlu0 %v2399
    %v2401 = vpop.xlane.xlu0 %2400
    %v2402 = vsel %vm148, %v2398, 0.0
    %2403 = vadd.xlane.f32.xlu0 %v2402
    %v2404 = vpop.xlane.xlu0 %2403
    %v2405 = vrcp.pop %v2401
    %v2406 = vrcp.pop %v2404
    %v2407 = vmul.f32 %v2396, %v2405
    %v2408 = vmul.f32 %v2398, %v2406
    %2409 = vrot.lane.b32.xlu0 %v140, 40
    %v2410 = vpop.permute.xlu0 %2409
    %v2413 = vsel %vm148, %v2407, 0
    %2415 = vmatprep.subr.mxu0 0.0
    %2416 = vmatpush1.msra.mxu0 %v2410
    %2417 = vmatprep.subr.mxu0 0.0
    %2418 = vmatpush1.msra.mxu0 0.0
    %2419 = vmatprep.subr.mxu0 0.0
    %2420 = vmatpush1.msra.mxu0 0.0
    %2421 = vmatprep.subr.mxu0 0.0
    %2422 = vmatpush1.msra.mxu0 0.0
    %2423 = vmatprep.subr.mxu0 0.0
    %2424 = vmatpush1.msra.mxu0 0.0
    %2425 = vmatprep.subr.mxu0 0.0
    %2426 = vmatpush1.msra.mxu0 0.0
    %2427 = vmatprep.subr.mxu0 0.0
    %2428 = vmatpush1.msra.mxu0 0.0
    %2429 = vmatprep.subr.mxu0 0.0
    %2430 = vmatpush1.msra.mxu0 0.0
    %2431 = vmatprep.subr.mxu0 0.0
    %2432 = vmatpush1.msra.mxu0 0.0
    %2433 = vmatprep.subr.mxu0 0.0
    %2434 = vmatpush1.msra.mxu0 0.0
    %2435 = vmatprep.subr.mxu0 0.0
    %2436 = vmatpush1.msra.mxu0 0.0
    %2437 = vmatprep.subr.mxu0 0.0
    %2438 = vmatpush1.msra.mxu0 0.0
    %2439 = vmatprep.subr.mxu0 0.0
    %2440 = vmatpush1.msra.mxu0 0.0
    %2441 = vmatprep.subr.mxu0 0.0
    %2442 = vmatpush1.msra.mxu0 0.0
    %2443 = vmatprep.subr.mxu0 0.0
    %2444 = vmatpush1.msra.mxu0 0.0
    %2445 = vmatprep.subr.mxu0 0.0
    %2446 = vmatpush1.msra.mxu0 0.0
    %2447 = vmatprep.subr.mxu0 0.0
    %2448 = vmatpush1.msra.mxu0 0.0
    %2449 = vmatprep.subr.mxu0 0.0
    %2450 = vmatpush1.msra.mxu0 0.0
    %2451 = vmatprep.subr.mxu0 0.0
    %2452 = vmatpush1.msra.mxu0 0.0
    %2453 = vmatprep.subr.mxu0 0.0
    %2454 = vmatpush1.msra.mxu0 0.0
    %2455 = vmatprep.subr.mxu0 0.0
    %2456 = vmatpush1.msra.mxu0 0.0
    %2457 = vmatprep.subr.mxu0 0.0
    %2458 = vmatpush1.msra.mxu0 0.0
    %2459 = vmatprep.subr.mxu0 0.0
    %2460 = vmatpush1.msra.mxu0 0.0
    %2461 = vmatprep.subr.mxu0 0.0
    %2462 = vmatpush1.msra.mxu0 0.0
    %2463 = vmatprep.subr.mxu0 0.0
    %2464 = vmatpush1.msra.mxu0 0.0
    %2465 = vmatprep.subr.mxu0 0.0
    %2466 = vmatpush1.msra.mxu0 0.0
    %2467 = vmatprep.subr.mxu0 0.0
    %2468 = vmatpush1.msra.mxu0 0.0
    %2469 = vmatprep.subr.mxu0 0.0
    %2470 = vmatpush1.msra.mxu0 0.0
    %2471 = vmatprep.subr.mxu0 0.0
    %2472 = vmatpush1.msra.mxu0 0.0
    %2473 = vmatprep.subr.mxu0 0.0
    %2474 = vmatpush1.msra.mxu0 0.0
    %2475 = vmatprep.subr.mxu0 0.0
    %2476 = vmatpush1.msra.mxu0 0.0
    %2477 = vmatprep.subr.mxu0 0.0
    %2478 = vmatpush1.msra.mxu0 0.0
    %2479 = vmatprep.mubr.f32.mxu0 0.0
    %2480 = vmatmul.mubr.f32.gmra.mrb[0].mxu0 %v2413
    %v2481 = vpop.f32.mrb[0].mxu0
    %v2482 = vadd.f32 0.0, %v2481
    %v2483 = vpop.f32.mrb[0].mxu0
    %2484 = vdwg.mxu0
    %2485 = vrot.lane.b32.xlu0 %v142, 40
    %v2486 = vpop.permute.xlu0 %2485
    %v2489 = vsel %vm148, %v2408, 0
    %2491 = vmatprep.subr.mxu0 0.0
    %2492 = vmatpush1.msra.mxu0 %v2486
    %2493 = vmatprep.subr.mxu0 0.0
    %2494 = vmatpush1.msra.mxu0 0.0
    %2495 = vmatprep.subr.mxu0 0.0
    %2496 = vmatpush1.msra.mxu0 0.0
    %2497 = vmatprep.subr.mxu0 0.0
    %2498 = vmatpush1.msra.mxu0 0.0
    %2499 = vmatprep.subr.mxu0 0.0
    %2500 = vmatpush1.msra.mxu0 0.0
    %2501 = vmatprep.subr.mxu0 0.0
    %2502 = vmatpush1.msra.mxu0 0.0
    %2503 = vmatprep.subr.mxu0 0.0
    %2504 = vmatpush1.msra.mxu0 0.0
    %2505 = vmatprep.subr.mxu0 0.0
    %2506 = vmatpush1.msra.mxu0 0.0
    %2507 = vmatprep.subr.mxu0 0.0
    %2508 = vmatpush1.msra.mxu0 0.0
    %2509 = vmatprep.subr.mxu0 0.0
    %2510 = vmatpush1.msra.mxu0 0.0
    %2511 = vmatprep.subr.mxu0 0.0
    %2512 = vmatpush1.msra.mxu0 0.0
    %2513 = vmatprep.subr.mxu0 0.0
    %2514 = vmatpush1.msra.mxu0 0.0
    %2515 = vmatprep.subr.mxu0 0.0
    %2516 = vmatpush1.msra.mxu0 0.0
    %2517 = vmatprep.subr.mxu0 0.0
    %2518 = vmatpush1.msra.mxu0 0.0
    %2519 = vmatprep.subr.mxu0 0.0
    %2520 = vmatpush1.msra.mxu0 0.0
    %2521 = vmatprep.subr.mxu0 0.0
    %2522 = vmatpush1.msra.mxu0 0.0
    %2523 = vmatprep.subr.mxu0 0.0
    %2524 = vmatpush1.msra.mxu0 0.0
    %2525 = vmatprep.subr.mxu0 0.0
    %2526 = vmatpush1.msra.mxu0 0.0
    %2527 = vmatprep.subr.mxu0 0.0
    %2528 = vmatpush1.msra.mxu0 0.0
    %2529 = vmatprep.subr.mxu0 0.0
    %2530 = vmatpush1.msra.mxu0 0.0
    %2531 = vmatprep.subr.mxu0 0.0
    %2532 = vmatpush1.msra.mxu0 0.0
    %2533 = vmatprep.subr.mxu0 0.0
    %2534 = vmatpush1.msra.mxu0 0.0
    %2535 = vmatprep.subr.mxu0 0.0
    %2536 = vmatpush1.msra.mxu0 0.0
    %2537 = vmatprep.subr.mxu0 0.0
    %2538 = vmatpush1.msra.mxu0 0.0
    %2539 = vmatprep.subr.mxu0 0.0
    %2540 = vmatpush1.msra.mxu0 0.0
    %2541 = vmatprep.subr.mxu0 0.0
    %2542 = vmatpush1.msra.mxu0 0.0
    %2543 = vmatprep.subr.mxu0 0.0
    %2544 = vmatpush1.msra.mxu0 0.0
    %2545 = vmatprep.subr.mxu0 0.0
    %2546 = vmatpush1.msra.mxu0 0.0
    %2547 = vmatprep.subr.mxu0 0.0
    %2548 = vmatpush1.msra.mxu0 0.0
    %2549 = vmatprep.subr.mxu0 0.0
    %2550 = vmatpush1.msra.mxu0 0.0
    %2551 = vmatprep.subr.mxu0 0.0
    %2552 = vmatpush1.msra.mxu0 0.0
    %2553 = vmatprep.subr.mxu0 0.0
    %2554 = vmatpush1.msra.mxu0 0.0
    %2555 = vmatprep.mubr.f32.mxu0 0.0
    %2556 = vmatmul.mubr.f32.gmra.mrb[0].mxu0 %v2489
    %v2557 = vpop.f32.mrb[0].mxu0
    %v2558 = vadd.f32 0.0, %v2557
    %v2559 = vpop.f32.mrb[0].mxu0
    %2560 = vdwg.mxu0
    %v2561 = vld [vmem:[%s3 + $0x78] sm:$0xff]
    %v2562 = vld [vmem:[%s3 + $0x80] sm:$0xff]
    %v2563 = vld [vmem:[%s3 + $0x88] sm:$0xff]
    %v2565 = vsel %vm820, %v2482, 0
    %v2568 = vsel %vm820, %v2558, 0
    %2570 = vmatprep.subr.mxu0 0.0
    %2571 = vmatpush1.msra.mxu0 %v2561
    %2572 = vmatprep.subr.mxu0 0.0
    %2573 = vmatpush1.msra.mxu0 %v2562
    %2574 = vmatprep.subr.mxu0 0.0
    %2575 = vmatpush1.msra.mxu0 %v2563
    %2576 = vmatprep.subr.mxu0 0.0
    %2577 = vmatpush1.msra.mxu0 0.0
    %2578 = vmatprep.subr.mxu0 0.0
    %2579 = vmatpush1.msra.mxu0 0.0
    %2580 = vmatprep.subr.mxu0 0.0
    %2581 = vmatpush1.msra.mxu0 0.0
    %2582 = vmatprep.subr.mxu0 0.0
    %2583 = vmatpush1.msra.mxu0 0.0
    %2584 = vmatprep.subr.mxu0 0.0
    %2585 = vmatpush1.msra.mxu0 0.0
    %2586 = vmatprep.subr.mxu0 0.0
    %2587 = vmatpush1.msra.mxu0 0.0
    %2588 = vmatprep.subr.mxu0 0.0
    %2589 = vmatpush1.msra.mxu0 0.0
    %2590 = vmatprep.subr.mxu0 0.0
    %2591 = vmatpush1.msra.mxu0 0.0
    %2592 = vmatprep.subr.mxu0 0.0
    %2593 = vmatpush1.msra.mxu0 0.0
    %2594 = vmatprep.subr.mxu0 0.0
    %2595 = vmatpush1.msra.mxu0 0.0
    %2596 = vmatprep.subr.mxu0 0.0
    %2597 = vmatpush1.msra.mxu0 0.0
    %2598 = vmatprep.subr.mxu0 0.0
    %2599 = vmatpush1.msra.mxu0 0.0
    %2600 = vmatprep.subr.mxu0 0.0
    %2601 = vmatpush1.msra.mxu0 0.0
    %2602 = vmatprep.subr.mxu0 0.0
    %2603 = vmatpush1.msra.mxu0 0.0
    %2604 = vmatprep.subr.mxu0 0.0
    %2605 = vmatpush1.msra.mxu0 0.0
    %2606 = vmatprep.subr.mxu0 0.0
    %2607 = vmatpush1.msra.mxu0 0.0
    %2608 = vmatprep.subr.mxu0 0.0
    %2609 = vmatpush1.msra.mxu0 0.0
    %2610 = vmatprep.subr.mxu0 0.0
    %2611 = vmatpush1.msra.mxu0 0.0
    %2612 = vmatprep.subr.mxu0 0.0
    %2613 = vmatpush1.msra.mxu0 0.0
    %2614 = vmatprep.subr.mxu0 0.0
    %2615 = vmatpush1.msra.mxu0 0.0
    %2616 = vmatprep.subr.mxu0 0.0
    %2617 = vmatpush1.msra.mxu0 0.0
    %2618 = vmatprep.subr.mxu0 0.0
    %2619 = vmatpush1.msra.mxu0 0.0
    %2620 = vmatprep.subr.mxu0 0.0
    %2621 = vmatpush1.msra.mxu0 0.0
    %2622 = vmatprep.subr.mxu0 0.0
    %2623 = vmatpush1.msra.mxu0 0.0
    %2624 = vmatprep.subr.mxu0 0.0
    %2625 = vmatpush1.msra.mxu0 0.0
    %2626 = vmatprep.subr.mxu0 0.0
    %2627 = vmatpush1.msra.mxu0 0.0
    %2628 = vmatprep.subr.mxu0 0.0
    %2629 = vmatpush1.msra.mxu0 0.0
    %2630 = vmatprep.subr.mxu0 0.0
    %2631 = vmatpush1.msra.mxu0 0.0
    %2632 = vmatprep.subr.mxu0 0.0
    %2633 = vmatpush1.msra.mxu0 0.0
    %2634 = vmatprep.mubr.f32.mxu0 0.0
    %2635 = vmatmul.mubr.f32.gmra.mrb[0].mxu0 %v2565
    %v2636 = vpop.f32.mrb[0].mxu0
    %v2637 = vadd.f32 0.0, %v2636
    %v2638 = vpop.f32.mrb[0].mxu0
    %2639 = vmatprep.mubr.f32.mxu0 0.0
    %2640 = vmatmul.mubr.f32.gmra.mrb[0].mxu0 %v2568
    %v2641 = vpop.f32.mrb[0].mxu0
    %v2642 = vadd.f32 0.0, %v2641
    %v2643 = vpop.f32.mrb[0].mxu0
    %2644 = vdwg.mxu0
    %v2645 = vadd.f32 %v2229, %v2637
    %v2646 = vadd.f32 %v2230, %v2642
    %v2647 = vld [vmem:[%s4] sm:$0x1]
    %v2649 = vlaneseq
    %v2650 = vshrl.u32 %v2649, 7
    %v2651 = vsub.s32 0, %v2650
    %v2652 = vrot.slane %v2647, %v2651
    %v2654 = vadd.f32 %v2645, %v2652
    %v2655 = vadd.f32 %v2646, %v2652
    %vm2656 = vcmp.ge.f32.partialorder %v2654, 0.0
    %vm2657 = vcmp.ge.f32.partialorder %v2655, 0.0
    %v2658 = vmul.f32 %v2654, 0.01
    %v2659 = vmul.f32 %v2655, 0.01
    %v2660 = vsel %vm2656, %v2654, %v2658
    %v2661 = vsel %vm2657, %v2655, %v2659
    %v2662 = vld [vmem:[%s0] sm:$0xff]
    %v2663 = vld [vmem:[%s0 + $0x8] sm:$0xff]
    %v2664 = vadd.f32 %v2662, %v2660
    %v2665 = vadd.f32 %v2663, %v2661
    %2666 = vst.msk [vmem:[#allocation2] sm:$0xff] %vm47, %v2664
    %2667 = vst.msk [vmem:[#allocation2 + $0x8] sm:$0xff] %vm47, %v2665
    // Predicated region
    $region22: #{multi_head_block.1} parent=1 // pred_check
      _
    $region23: #{multi_head_block.1} parent=1 // pred_check_branch
      %2669 = sbr.rel (0) target = $region25
    $region24: #{multi_head_block.1} parent=1 // pred_region
      %s2671 = ssub.s32 256, 256
      %2672 = vsyncadd [#allocation3], %s2671
      %s2673 = sshll.u32 [#allocation2], 4
      %s2674 = int_to_ptr.vmem [resolvable:$true] %s2673
      %2679 = dma.vmem_to_hbm [thread:$0]  %s2674, 256, %s5, [#allocation3], 128, 128, 8
    $region25: #{multi_head_block.1} parent=1 // pred_fallthru
      _
    // Predicated region
    $region26: #{multi_head_block.1} parent=1 // pred_check
      _
    $region27: #{multi_head_block.1} parent=1 // pred_check_branch
      %2681 = sbr.rel (0) target = $region29
    $region28: #{multi_head_block.1} parent=1 // pred_region
      %2682 = dma.done [#allocation3], 256
    $region29: #{multi_head_block.1} parent=1 // pred_fallthru
      _
    %2683 = vsyncpa [#allocation3], 1

</llo_original>
